<compile_context>
chip_gen: v5e
topology: v5e:2x2
jax: 0.10.0
libtpu: 0.0.40
codegen_flags: <defaults>
</compile_context>

<pallas_src>
import functools

import jax
import jax.numpy as jnp
from jax.experimental import pallas as pl
from jax.experimental.pallas import tpu as pltpu

# ----- constants (small, consistent with the module) -------------------------
N_MFCC = 16          # audio feature width per frame
LSTM_DIM = 32        # LSTM hidden size
VIDEO_FEAT = 16      # per-frame feature size produced by VideoCNN
COMBINE_SIZE = VIDEO_FEAT + N_MFCC   # LSTM input size
NUM_CLASSES = 2

# Safe scoped-VMEM request on v5e/v6e (128 MiB) and v7x (64 MiB physical).
_VMEM_LIMIT = 32 * 1024 * 1024


# =============================================================================
# Conv matmul: (O, K) @ (K, N*H*W) + b -> ReLU, lane-dense output
# =============================================================================
def _conv_mm_kernel(w_ref, b_ref, p_ref, o_ref):
    acc = jnp.dot(w_ref[...], p_ref[...], preferred_element_type=jnp.float32)
    acc = acc + b_ref[...]
    o_ref[...] = jnp.maximum(acc, 0.0)


def _pick_lane_tile(n):
    for t in (512, 256, 128):
        if n % t == 0:
            return t
    return n


def conv_matmul_relu(w_flat, b, patches):
    """w_flat: (O, K) bf16; patches: (K, NHW) bf16 -> (O, NHW) f32 with ReLU."""
    O, K = w_flat.shape
    K2, NHW = patches.shape
    assert K == K2
    tile = _pick_lane_tile(NHW)
    return pl.pallas_call(
        _conv_mm_kernel,
        grid=(NHW // tile,),
        out_shape=jax.ShapeDtypeStruct((O, NHW), jnp.float32),
        in_specs=[
            pl.BlockSpec((O, K), lambda j: (0, 0)),      # weights resident in VMEM
            pl.BlockSpec((O, 1), lambda j: (0, 0)),      # bias resident
            pl.BlockSpec((K, tile), lambda j: (0, j)),   # im2col lane tile (pipelined)
        ],
        out_specs=pl.BlockSpec((O, tile), lambda j: (0, j)),
        compiler_params=pltpu.CompilerParams(
            dimension_semantics=("parallel",),           # shards across v7x cores
            vmem_limit_bytes=_VMEM_LIMIT),
    )(w_flat, b.reshape(O, 1).astype(jnp.float32), patches)


# =============================================================================
# Generic dense: (M, K) @ (K, N) + b  (used for the LSTM input projections)
# =============================================================================
def _dense_kernel(x_ref, w_ref, b_ref, o_ref):
    acc = jnp.dot(x_ref[...], w_ref[...], preferred_element_type=jnp.float32)
    o_ref[...] = acc + b_ref[...]


def dense(x, w, b):
    M, K = x.shape
    K2, N = w.shape
    assert K == K2
    return pl.pallas_call(
        _dense_kernel,
        grid=(1,),
        out_shape=jax.ShapeDtypeStruct((M, N), jnp.float32),
        in_specs=[pl.BlockSpec((M, K), lambda i: (0, 0)),
                  pl.BlockSpec((K, N), lambda i: (0, 0)),
                  pl.BlockSpec((1, N), lambda i: (0, 0))],
        out_specs=pl.BlockSpec((M, N), lambda i: (0, 0)),
        compiler_params=pltpu.CompilerParams(vmem_limit_bytes=_VMEM_LIMIT),
    )(x, w, b.reshape(1, N).astype(jnp.float32))


# =============================================================================
# Fused bidirectional LSTM layers
# =============================================================================
def _lstm_gates(gates, c_prev, hidden):
    """PyTorch gate order i, f, g, o — all elementwise math kept in f32."""
    H = hidden
    i = jax.nn.sigmoid(gates[:, 0:H])
    f = jax.nn.sigmoid(gates[:, H:2 * H])
    g = jnp.tanh(gates[:, 2 * H:3 * H])
    o = jax.nn.sigmoid(gates[:, 3 * H:4 * H])
    c_new = f * c_prev + i * g
    h_new = o * jnp.tanh(c_new)
    return h_new, c_new


def _bilstm_full_kernel(xg_f_ref, xg_b_ref, whh_f_ref, whh_b_ref,
                        hs_f_ref, hs_b_ref, h_f, c_f, h_b, c_b, *, hidden):
    t = pl.program_id(0)

    @pl.when(t == 0)
    def _():
        for r in (h_f, c_f, h_b, c_b):
            r[...] = jnp.zeros_like(r)

    gates_f = xg_f_ref[0] + jnp.dot(h_f[...], whh_f_ref[...],
                                    preferred_element_type=jnp.float32)
    hf, cf = _lstm_gates(gates_f, c_f[...], hidden)
    gates_b = xg_b_ref[0] + jnp.dot(h_b[...], whh_b_ref[...],
                                    preferred_element_type=jnp.float32)
    hb, cb = _lstm_gates(gates_b, c_b[...], hidden)

    h_f[...] = hf
    c_f[...] = cf
    h_b[...] = hb
    c_b[...] = cb
    hs_f_ref[0] = hf
    hs_b_ref[0] = hb


def bilstm_layer_full(xg, whh_f, whh_b, hidden):
    """xg: (T, B, 8H) time-major gate pre-activations [fwd | bwd].
    Returns (T, B, 2H).  One pallas_call per layer; state in VMEM scratch."""
    T, B, G2 = xg.shape
    H = hidden
    assert G2 == 8 * H
    kernel = functools.partial(_bilstm_full_kernel, hidden=H)
    hs_f, hs_b = pl.pallas_call(
        kernel,
        grid=(T,),
        out_shape=(jax.ShapeDtypeStruct((T, B, H), jnp.float32),
                   jax.ShapeDtypeStruct((T, B, H), jnp.float32)),
        in_specs=[
            pl.BlockSpec((1, B, 4 * H), lambda t: (t, 0, 0)),          # fwd gates
            pl.BlockSpec((1, B, 4 * H), lambda t: (T - 1 - t, 0, 1)),  # bwd gates (reversed view)
            pl.BlockSpec((H, 4 * H), lambda t: (0, 0)),                # whh fwd (resident)
            pl.BlockSpec((H, 4 * H), lambda t: (0, 0)),                # whh bwd (resident)
        ],
        out_specs=(pl.BlockSpec((1, B, H), lambda t: (t, 0, 0)),
                   pl.BlockSpec((1, B, H), lambda t: (T - 1 - t, 0, 0))),
        scratch_shapes=[pltpu.VMEM((B, H), jnp.float32)] * 4,   # h_f, c_f, h_b, c_b
        compiler_params=pltpu.CompilerParams(
            dimension_semantics=("arbitrary",),
            vmem_limit_bytes=_VMEM_LIMIT),
    )(xg, xg, whh_f, whh_b)
    return jnp.concatenate([hs_f, hs_b], axis=-1)


def _bilstm_last_kernel(xg_f_ref, xg_b_ref, whh_f_ref, out_ref, h_f, c_f, *, hidden):
    H = hidden
    t = pl.program_id(0)
    T = pl.num_programs(0)

    @pl.when(t == 0)
    def _():
        h_f[...] = jnp.zeros_like(h_f)
        c_f[...] = jnp.zeros_like(c_f)
        # The backward direction only contributes its first (reversed) step to
        # the last-timestep output; with zero initial state the recurrent
        # matmul vanishes, so a single gate evaluation suffices.
        zeros = jnp.zeros((xg_b_ref.shape[1], H), jnp.float32)
        hb, _ = _lstm_gates(xg_b_ref[0], zeros, H)
        out_ref[:, H:2 * H] = hb

    gates_f = xg_f_ref[0] + jnp.dot(h_f[...], whh_f_ref[...],
                                    preferred_element_type=jnp.float32)
    hf, cf = _lstm_gates(gates_f, c_f[...], H)
    h_f[...] = hf
    c_f[...] = cf

    @pl.when(t == T - 1)
    def _():
        out_ref[:, 0:H] = hf


def bilstm_layer_last(xg, whh_f, hidden):
    """Layer whose output is only consumed at the last timestep -> (B, 2H)."""
    T, B, G2 = xg.shape
    H = hidden
    assert G2 == 8 * H
    kernel = functools.partial(_bilstm_last_kernel, hidden=H)
    return pl.pallas_call(
        kernel,
        grid=(T,),
        out_shape=jax.ShapeDtypeStruct((B, 2 * H), jnp.float32),
        in_specs=[
            pl.BlockSpec((1, B, 4 * H), lambda t: (t, 0, 0)),      # fwd gates
            pl.BlockSpec((1, B, 4 * H), lambda t: (T - 1, 0, 1)),  # bwd gates @ t=T-1 (resident)
            pl.BlockSpec((H, 4 * H), lambda t: (0, 0)),            # whh fwd (resident)
        ],
        out_specs=pl.BlockSpec((B, 2 * H), lambda t: (0, 0)),      # resident accumulator
        scratch_shapes=[pltpu.VMEM((B, H), jnp.float32)] * 2,      # h_f, c_f
        compiler_params=pltpu.CompilerParams(
            dimension_semantics=("arbitrary",),
            vmem_limit_bytes=_VMEM_LIMIT),
    )(xg, xg, whh_f)


# =============================================================================
# Fused FC tail: fc1 -> fc2 (dropout is identity at inference)
# =============================================================================
def _fc_tail_kernel(x_ref, w1_ref, b1_ref, w2_ref, b2_ref, o_ref):
    h = jnp.dot(x_ref[...], w1_ref[...], preferred_element_type=jnp.float32)
    h = h + b1_ref[...]
    o = jnp.dot(h, w2_ref[...], preferred_element_type=jnp.float32)
    o_ref[...] = o + b2_ref[...]


def fc_tail(x, w1, b1, w2, b2):
    B, D = x.shape
    D1 = w1.shape[1]
    C = w2.shape[1]
    return pl.pallas_call(
        _fc_tail_kernel,
        grid=(1,),
        out_shape=jax.ShapeDtypeStruct((B, C), jnp.float32),
        in_specs=[
            pl.BlockSpec((B, D), lambda i: (0, 0)),
            pl.BlockSpec((D, D1), lambda i: (0, 0)),
            pl.BlockSpec((1, D1), lambda i: (0, 0)),
            pl.BlockSpec((D1, C), lambda i: (0, 0)),
            pl.BlockSpec((1, C), lambda i: (0, 0)),
        ],
        out_specs=pl.BlockSpec((B, C), lambda i: (0, 0)),
        compiler_params=pltpu.CompilerParams(vmem_limit_bytes=_VMEM_LIMIT),
    )(x, w1, b1.reshape(1, D1), w2, b2.reshape(1, C))


# =============================================================================
# VideoCNN (channel-major pipeline; pooling / im2col glue stays in plain JAX)
# =============================================================================
def im2col_cf(x, kh, kw):
    """x: (C, N, H, W) -> (C*kh*kw, N*H*W), stride 1, 'same' padding.
    K ordered C-major / kh / kw to match PyTorch weight.reshape(O, C*kh*kw)."""
    C, N, H, W = x.shape
    ph, pw = kh // 2, kw // 2
    xp = jnp.pad(x, ((0, 0), (0, 0), (ph, ph), (pw, pw)))
    patches = [xp[:, :, i:i + H, j:j + W] for i in range(kh) for j in range(kw)]
    p = jnp.stack(patches, axis=1)                     # (C, kh*kw, N, H, W)
    return p.reshape(C * kh * kw, N * H * W)


def video_cnn(x_nchw, params):
    """conv(3x3)+ReLU -> maxpool(2) -> conv(3x3)+ReLU -> global avg pool.
    x: (N, C, H, W) -> (N, VIDEO_FEAT)."""
    N, C, H, W = x_nchw.shape
    assert H % 2 == 0 and W % 2 == 0, "maxpool(2) requires even spatial dims"
    x = x_nchw.transpose(1, 0, 2, 3)                               # (C, N, H, W)

    p1 = im2col_cf(x, 3, 3).astype(jnp.bfloat16)                   # (C*9, N*H*W)
    y = conv_matmul_relu(params["conv1_wf"], params["conv1_b"], p1)
    C1 = y.shape[0]
    H2, W2 = H // 2, W // 2
    y = y.reshape(C1, N, H2, 2, W2, 2).max(axis=(3, 5))            # maxpool 2x2

    p2 = im2col_cf(y, 3, 3).astype(jnp.bfloat16)                   # (C1*9, N*H2*W2)
    y2 = conv_matmul_relu(params["conv2_wf"], params["conv2_b"], p2)
    C2 = y2.shape[0]
    y2 = y2.reshape(C2, N, H2, W2).mean(axis=(2, 3))               # global avg pool
    return y2.T                                                    # (N, VIDEO_FEAT)


# =============================================================================
# Full forward pass
# =============================================================================
def cnn_lstm_av_forward(params, video_input, audio_input):
    B, F, C, H, W = video_input.shape
    x_video = video_cnn(video_input.reshape(B * F, C, H, W), params)
    x_video = x_video.reshape(B, F, VIDEO_FEAT)

    audio = audio_input.reshape(B, -1)
    num_mfcc_features = audio.shape[1] // N_MFCC       # must equal F for concat
    x_audio = audio.reshape(B, num_mfcc_features, N_MFCC)

    x = jnp.concatenate([x_video, x_audio], axis=-1)   # (B, T, COMBINE_SIZE)
    T = F
    x_tm = x.transpose(1, 0, 2)                        # time-major (T, B, In)

    # ---- LSTM layer 1: full bidirectional sequence --------------------------
    l1 = params["lstm"][0]
    xg1 = dense(x_tm.reshape(T * B, COMBINE_SIZE).astype(jnp.bfloat16),
                l1["w_in"], l1["b_in"]).reshape(T, B, 8 * LSTM_DIM)
    h1 = bilstm_layer_full(xg1, l1["whh_f"], l1["whh_b"], LSTM_DIM)   # (T, B, 2H)

    # ---- LSTM layer 2: only the last timestep is consumed downstream --------
    l2 = params["lstm"][1]
    xg2 = dense(h1.reshape(T * B, 2 * LSTM_DIM).astype(jnp.bfloat16),
                l2["w_in"], l2["b_in"]).reshape(T, B, 8 * LSTM_DIM)
    x_last = bilstm_layer_last(xg2, l2["whh_f"], LSTM_DIM)            # (B, 2H)

    # ---- dropout = identity at inference; fc1 -> fc2 fused -------------------
    return fc_tail(x_last, params["fc1_wt"], params["fc1_b"],
                   params["fc2_wt"], params["fc2_b"])


# =============================================================================
# Deterministic parameter init (PyTorch layout) + one-time layout prep
# =============================================================================
def init_params(key):
    ks = jax.random.split(key, 24)

    def nrm(k, shape, scale=0.1):
        return jax.random.normal(k, shape, jnp.float32) * scale

    p = {}
    p["conv1_w"] = nrm(ks[0], (8, 3, 3, 3))
    p["conv1_b"] = nrm(ks[1], (8,))
    p["conv2_w"] = nrm(ks[2], (VIDEO_FEAT, 8, 3, 3))
    p["conv2_b"] = nrm(ks[3], (VIDEO_FEAT,))

    lstm = []
    idx = 4
    in_size = COMBINE_SIZE
    for _layer in range(2):
        layer_params = []
        for _direction in range(2):
            w_ih = nrm(ks[idx], (4 * LSTM_DIM, in_size)); idx += 1
            w_hh = nrm(ks[idx], (4 * LSTM_DIM, LSTM_DIM)); idx += 1
            b_ih = nrm(ks[idx], (4 * LSTM_DIM,)); idx += 1
            b_hh = nrm(ks[idx], (4 * LSTM_DIM,)); idx += 1
            layer_params.append((w_ih, w_hh, b_ih, b_hh))
        lstm.append(layer_params)
        in_size = 2 * LSTM_DIM
    p["lstm"] = lstm

    p["fc1_w"] = nrm(ks[idx], (128, 2 * LSTM_DIM)); idx += 1
    p["fc1_b"] = nrm(ks[idx], (128,)); idx += 1
    p["fc2_w"] = nrm(ks[idx], (NUM_CLASSES, 128)); idx += 1
    p["fc2_b"] = nrm(ks[idx], (NUM_CLASSES,)); idx += 1
    return p


def prepare_params(p):
    """One-time weight prep outside the jitted forward: flatten / transpose /
    fold biases / cast matmul operands to bf16 (f32 accumulation in-kernel)."""
    out = {
        "conv1_wf": p["conv1_w"].reshape(p["conv1_w"].shape[0], -1).astype(jnp.bfloat16),
        "conv1_b": p["conv1_b"].astype(jnp.float32),
        "conv2_wf": p["conv2_w"].reshape(p["conv2_w"].shape[0], -1).astype(jnp.bfloat16),
        "conv2_b": p["conv2_b"].astype(jnp.float32),
        "fc1_wt": p["fc1_w"].T.astype(jnp.float32),
        "fc1_b": p["fc1_b"].astype(jnp.float32),
        "fc2_wt": p["fc2_w"].T.astype(jnp.float32),
        "fc2_b": p["fc2_b"].astype(jnp.float32),
        "lstm": [],
    }
    for layer in p["lstm"]:
        (wif, whf, bif, bhf), (wib, whb, bib, bhb) = layer
        out["lstm"].append({
            # combined fwd|bwd input projection (In, 8H), bf16 operands
            "w_in": jnp.concatenate([wif.T, wib.T], axis=1).astype(jnp.bfloat16),
            "b_in": jnp.concatenate([bif + bhf, bib + bhb]).astype(jnp.float32),
            # recurrent weights stay f32 (resident in VMEM inside the kernel)
            "whh_f": whf.T.astype(jnp.float32),
            "whh_b": whb.T.astype(jnp.float32),
        })
    return out


if __name__ == "__main__":
    key = jax.random.PRNGKey(0)
    kp, kv, ka = jax.random.split(key, 3)
    params = prepare_params(init_params(kp))

    B, F, C, H, W = 2, 4, 3, 16, 16
    video = jax.random.normal(kv, (B, F, C, H, W), jnp.float32)
    audio = jax.random.normal(ka, (B, F, N_MFCC), jnp.float32)

    out = jax.jit(cnn_lstm_av_forward)(params, video, audio)
    jax.block_until_ready(out)
    assert out.shape == (B, NUM_CLASSES), out.shape
    print("KERNEL_OK")
</pallas_src>

<mosaic_0001>
module attributes {stable_mosaic.version = 11 : i64} {
  func.func @_conv_mm_kernel(%arg0: i32, %arg1: memref<8x27xbf16, #tpu.memory_space<vmem>>, %arg2: memref<8x1xf32, #tpu.memory_space<vmem>>, %arg3: memref<27x512xbf16, #tpu.memory_space<vmem>>, %arg4: memref<8x512xf32, #tpu.memory_space<vmem>>) attributes {dimension_semantics = [#tpu.dimension_semantics<parallel>], iteration_bounds = array<i64: 4>, scalar_prefetch = 0 : i64, scratch_operands = 0 : i64, tpu.core_type = #tpu.core_type<tc>, window_params = [{pipeline_mode = #tpu.pipeline_mode<synchronous>, transform_indices = @transform_0, window_bounds = array<i64: 8, 27>}, {pipeline_mode = #tpu.pipeline_mode<synchronous>, transform_indices = @transform_1, window_bounds = array<i64: 8, 1>}, {transform_indices = @transform_2, window_bounds = array<i64: 27, 512>}, {transform_indices = @transform_3, window_bounds = array<i64: 8, 512>}]} {
    %c0 = arith.constant 0 : index
    %c0_0 = arith.constant 0 : index
    %0 = vector.load %arg1[%c0, %c0_0] : memref<8x27xbf16, #tpu.memory_space<vmem>>, vector<8x27xbf16>
    %c0_1 = arith.constant 0 : index
    %c0_2 = arith.constant 0 : index
    %1 = vector.load %arg3[%c0_1, %c0_2] : memref<27x512xbf16, #tpu.memory_space<vmem>>, vector<27x512xbf16>
    %cst = arith.constant dense<0.000000e+00> : vector<8x512xf32>
    %2 = tpu.matmul %0, %1, %cst {dimension_numbers = #tpu.dot_dimension_numbers<[1], [0], [0], [1], [0, 0, 1, 1], [], []>} : vector<8x27xbf16>, vector<27x512xbf16>, vector<8x512xf32> -> vector<8x512xf32>
    %c0_3 = arith.constant 0 : index
    %c0_4 = arith.constant 0 : index
    %3 = vector.load %arg2[%c0_3, %c0_4] : memref<8x1xf32, #tpu.memory_space<vmem>>, vector<8x1xf32>
    %4 = vector.broadcast %3 : vector<8x1xf32> to vector<8x512xf32>
    %5 = arith.addf %2, %4 : vector<8x512xf32>
    %cst_5 = arith.constant 0.000000e+00 : f32
    %6 = vector.broadcast %cst_5 : f32 to vector<8x512xf32>
    %7 = arith.maximumf %5, %6 : vector<8x512xf32>
    %c0_6 = arith.constant 0 : index
    %c0_7 = arith.constant 0 : index
    %8 = vector.load %arg4[%c0_6, %c0_7] : memref<8x512xf32, #tpu.memory_space<vmem>>, vector<8x512xf32>
    tpu.vector_store %arg4[%c0_6, %c0_7], %7 {strides = array<i32>} : memref<8x512xf32, #tpu.memory_space<vmem>>, vector<8x512xf32>,
    return
  }
  func.func @transform_0(%arg0: i32) -> (i32, i32) {
    %c0_i32 = arith.constant 0 : i32
    %c0_i32_0 = arith.constant 0 : i32
    %c0_i32_1 = arith.constant 0 : i32
    return %c0_i32, %c0_i32_0 : i32, i32
  }
  func.func @transform_1(%arg0: i32) -> (i32, i32) {
    %c0_i32 = arith.constant 0 : i32
    %c0_i32_0 = arith.constant 0 : i32
    %c0_i32_1 = arith.constant 0 : i32
    return %c0_i32, %c0_i32_0 : i32, i32
  }
  func.func @transform_2(%arg0: i32) -> (i32, i32) {
    %c0_i32 = arith.constant 0 : i32
    %c0_i32_0 = arith.constant 0 : i32
    return %c0_i32, %arg0 : i32, i32
  }
  func.func @transform_3(%arg0: i32) -> (i32, i32) {
    %c0_i32 = arith.constant 0 : i32
    %c0_i32_0 = arith.constant 0 : i32
    return %c0_i32, %arg0 : i32, i32
  }
}

module attributes {stable_mosaic.version = 11 : i64} {
  func.func @_conv_mm_kernel(%arg0: i32, %arg1: memref<16x72xbf16, #tpu.memory_space<vmem>>, %arg2: memref<16x1xf32, #tpu.memory_space<vmem>>, %arg3: memref<72x512xbf16, #tpu.memory_space<vmem>>, %arg4: memref<16x512xf32, #tpu.memory_space<vmem>>) attributes {dimension_semantics = [#tpu.dimension_semantics<parallel>], iteration_bounds = array<i64: 1>, scalar_prefetch = 0 : i64, scratch_operands = 0 : i64, tpu.core_type = #tpu.core_type<tc>, window_params = [{pipeline_mode = #tpu.pipeline_mode<synchronous>, transform_indices = @transform_0, window_bounds = array<i64: 16, 72>}, {pipeline_mode = #tpu.pipeline_mode<synchronous>, transform_indices = @transform_1, window_bounds = array<i64: 16, 1>}, {transform_indices = @transform_2, window_bounds = array<i64: 72, 512>}, {transform_indices = @transform_3, window_bounds = array<i64: 16, 512>}]} {
    %c0 = arith.constant 0 : index
    %c0_0 = arith.constant 0 : index
    %0 = vector.load %arg1[%c0, %c0_0] : memref<16x72xbf16, #tpu.memory_space<vmem>>, vector<16x72xbf16>
    %c0_1 = arith.constant 0 : index
    %c0_2 = arith.constant 0 : index
    %1 = vector.load %arg3[%c0_1, %c0_2] : memref<72x512xbf16, #tpu.memory_space<vmem>>, vector<72x512xbf16>
    %cst = arith.constant dense<0.000000e+00> : vector<16x512xf32>
    %2 = tpu.matmul %0, %1, %cst {dimension_numbers = #tpu.dot_dimension_numbers<[1], [0], [0], [1], [0, 0, 1, 1], [], []>} : vector<16x72xbf16>, vector<72x512xbf16>, vector<16x512xf32> -> vector<16x512xf32>
    %c0_3 = arith.constant 0 : index
    %c0_4 = arith.constant 0 : index
    %3 = vector.load %arg2[%c0_3, %c0_4] : memref<16x1xf32, #tpu.memory_space<vmem>>, vector<16x1xf32>
    %4 = vector.broadcast %3 : vector<16x1xf32> to vector<16x512xf32>
    %5 = arith.addf %2, %4 : vector<16x512xf32>
    %cst_5 = arith.constant 0.000000e+00 : f32
    %6 = vector.broadcast %cst_5 : f32 to vector<16x512xf32>
    %7 = arith.maximumf %5, %6 : vector<16x512xf32>
    %c0_6 = arith.constant 0 : index
    %c0_7 = arith.constant 0 : index
    %8 = vector.load %arg4[%c0_6, %c0_7] : memref<16x512xf32, #tpu.memory_space<vmem>>, vector<16x512xf32>
    tpu.vector_store %arg4[%c0_6, %c0_7], %7 {strides = array<i32>} : memref<16x512xf32, #tpu.memory_space<vmem>>, vector<16x512xf32>,
    return
  }
  func.func @transform_0(%arg0: i32) -> (i32, i32) {
    %c0_i32 = arith.constant 0 : i32
    %c0_i32_0 = arith.constant 0 : i32
    %c0_i32_1 = arith.constant 0 : i32
    return %c0_i32, %c0_i32_0 : i32, i32
  }
  func.func @transform_1(%arg0: i32) -> (i32, i32) {
    %c0_i32 = arith.constant 0 : i32
    %c0_i32_0 = arith.constant 0 : i32
    %c0_i32_1 = arith.constant 0 : i32
    return %c0_i32, %c0_i32_0 : i32, i32
  }
  func.func @transform_2(%arg0: i32) -> (i32, i32) {
    %c0_i32 = arith.constant 0 : i32
    %c0_i32_0 = arith.constant 0 : i32
    return %c0_i32, %arg0 : i32, i32
  }
  func.func @transform_3(%arg0: i32) -> (i32, i32) {
    %c0_i32 = arith.constant 0 : i32
    %c0_i32_0 = arith.constant 0 : i32
    return %c0_i32, %arg0 : i32, i32
  }
}

module attributes {stable_mosaic.version = 11 : i64} {
  func.func @_dense_kernel(%arg0: i32, %arg1: memref<8x32xbf16, #tpu.memory_space<vmem>>, %arg2: memref<32x256xbf16, #tpu.memory_space<vmem>>, %arg3: memref<1x256xf32, #tpu.memory_space<vmem>>, %arg4: memref<8x256xf32, #tpu.memory_space<vmem>>) attributes {dimension_semantics = [#tpu.dimension_semantics<arbitrary>], iteration_bounds = array<i64: 1>, scalar_prefetch = 0 : i64, scratch_operands = 0 : i64, tpu.core_type = #tpu.core_type<tc>, window_params = [{pipeline_mode = #tpu.pipeline_mode<synchronous>, transform_indices = @transform_0, window_bounds = array<i64: 8, 32>}, {pipeline_mode = #tpu.pipeline_mode<synchronous>, transform_indices = @transform_1, window_bounds = array<i64: 32, 256>}, {pipeline_mode = #tpu.pipeline_mode<synchronous>, transform_indices = @transform_2, window_bounds = array<i64: 1, 256>}, {pipeline_mode = #tpu.pipeline_mode<synchronous>, transform_indices = @transform_3, window_bounds = array<i64: 8, 256>}]} {
    %c0 = arith.constant 0 : index
    %c0_0 = arith.constant 0 : index
    %0 = vector.load %arg1[%c0, %c0_0] : memref<8x32xbf16, #tpu.memory_space<vmem>>, vector<8x32xbf16>
    %c0_1 = arith.constant 0 : index
    %c0_2 = arith.constant 0 : index
    %1 = vector.load %arg2[%c0_1, %c0_2] : memref<32x256xbf16, #tpu.memory_space<vmem>>, vector<32x256xbf16>
    %cst = arith.constant dense<0.000000e+00> : vector<8x256xf32>
    %2 = tpu.matmul %0, %1, %cst {dimension_numbers = #tpu.dot_dimension_numbers<[1], [0], [0], [1], [0, 0, 1, 1], [], []>} : vector<8x32xbf16>, vector<32x256xbf16>, vector<8x256xf32> -> vector<8x256xf32>
    %c0_3 = arith.constant 0 : index
    %c0_4 = arith.constant 0 : index
    %3 = vector.load %arg3[%c0_3, %c0_4] : memref<1x256xf32, #tpu.memory_space<vmem>>, vector<1x256xf32>
    %4 = vector.broadcast %3 : vector<1x256xf32> to vector<8x256xf32>
    %5 = arith.addf %2, %4 : vector<8x256xf32>
    %c0_5 = arith.constant 0 : index
    %c0_6 = arith.constant 0 : index
    %6 = vector.load %arg4[%c0_5, %c0_6] : memref<8x256xf32, #tpu.memory_space<vmem>>, vector<8x256xf32>
    tpu.vector_store %arg4[%c0_5, %c0_6], %5 {strides = array<i32>} : memref<8x256xf32, #tpu.memory_space<vmem>>, vector<8x256xf32>,
    return
  }
  func.func @transform_0(%arg0: i32) -> (i32, i32) {
    %c0_i32 = arith.constant 0 : i32
    %c0_i32_0 = arith.constant 0 : i32
    %c0_i32_1 = arith.constant 0 : i32
    return %c0_i32, %c0_i32_0 : i32, i32
  }
  func.func @transform_1(%arg0: i32) -> (i32, i32) {
    %c0_i32 = arith.constant 0 : i32
    %c0_i32_0 = arith.constant 0 : i32
    %c0_i32_1 = arith.constant 0 : i32
    return %c0_i32, %c0_i32_0 : i32, i32
  }
  func.func @transform_2(%arg0: i32) -> (i32, i32) {
    %c0_i32 = arith.constant 0 : i32
    %c0_i32_0 = arith.constant 0 : i32
    %c0_i32_1 = arith.constant 0 : i32
    return %c0_i32, %c0_i32_0 : i32, i32
  }
  func.func @transform_3(%arg0: i32) -> (i32, i32) {
    %c0_i32 = arith.constant 0 : i32
    %c0_i32_0 = arith.constant 0 : i32
    %c0_i32_1 = arith.constant 0 : i32
    return %c0_i32, %c0_i32_0 : i32, i32
  }
}

module attributes {stable_mosaic.version = 11 : i64} {
  func.func @_bilstm_full_kernel(%arg0: i32, %arg1: memref<1x2x128xf32, #tpu.memory_space<vmem>>, %arg2: memref<1x2x128xf32, #tpu.memory_space<vmem>>, %arg3: memref<32x128xf32, #tpu.memory_space<vmem>>, %arg4: memref<32x128xf32, #tpu.memory_space<vmem>>, %arg5: memref<1x2x32xf32, #tpu.memory_space<vmem>>, %arg6: memref<1x2x32xf32, #tpu.memory_space<vmem>>, %arg7: memref<2x32xf32, #tpu.memory_space<vmem>>, %arg8: memref<2x32xf32, #tpu.memory_space<vmem>>, %arg9: memref<2x32xf32, #tpu.memory_space<vmem>>, %arg10: memref<2x32xf32, #tpu.memory_space<vmem>>) attributes {dimension_semantics = [#tpu.dimension_semantics<arbitrary>], iteration_bounds = array<i64: 4>, scalar_prefetch = 0 : i64, scratch_operands = 4 : i64, tpu.core_type = #tpu.core_type<tc>, window_params = [{transform_indices = @transform_0, window_bounds = array<i64: 1, 2, 128>}, {transform_indices = @transform_1, window_bounds = array<i64: 1, 2, 128>}, {pipeline_mode = #tpu.pipeline_mode<synchronous>, transform_indices = @transform_2, window_bounds = array<i64: 32, 128>}, {pipeline_mode = #tpu.pipeline_mode<synchronous>, transform_indices = @transform_3, window_bounds = array<i64: 32, 128>}, {transform_indices = @transform_4, window_bounds = array<i64: 1, 2, 32>}, {transform_indices = @transform_5, window_bounds = array<i64: 1, 2, 32>}]} {
    %c0_i32 = arith.constant 0 : i32
    %0 = arith.cmpi eq, %arg0, %c0_i32 : i32
    %1 = arith.extui %0 : i1 to i32
    %c0_i32_0 = arith.constant 0 : i32
    %2 = arith.cmpi ne, %1, %c0_i32_0 : i32
    scf.if %2 {
      %cst_39 = arith.constant 0.000000e+00 : f32
      %77 = vector.broadcast %cst_39 : f32 to vector<2x32xf32>
      %c0_40 = arith.constant 0 : index
      %c0_41 = arith.constant 0 : index
      %78 = vector.load %arg7[%c0_40, %c0_41] : memref<2x32xf32, #tpu.memory_space<vmem>>, vector<2x32xf32>
      tpu.vector_store %arg7[%c0_40, %c0_41], %77 {strides = array<i32>} : memref<2x32xf32, #tpu.memory_space<vmem>>, vector<2x32xf32>,
      %cst_42 = arith.constant 0.000000e+00 : f32
      %79 = vector.broadcast %cst_42 : f32 to vector<2x32xf32>
      %c0_43 = arith.constant 0 : index
      %c0_44 = arith.constant 0 : index
      %80 = vector.load %arg8[%c0_43, %c0_44] : memref<2x32xf32, #tpu.memory_space<vmem>>, vector<2x32xf32>
      tpu.vector_store %arg8[%c0_43, %c0_44], %79 {strides = array<i32>} : memref<2x32xf32, #tpu.memory_space<vmem>>, vector<2x32xf32>,
      %cst_45 = arith.constant 0.000000e+00 : f32
      %81 = vector.broadcast %cst_45 : f32 to vector<2x32xf32>
      %c0_46 = arith.constant 0 : index
      %c0_47 = arith.constant 0 : index
      %82 = vector.load %arg9[%c0_46, %c0_47] : memref<2x32xf32, #tpu.memory_space<vmem>>, vector<2x32xf32>
      tpu.vector_store %arg9[%c0_46, %c0_47], %81 {strides = array<i32>} : memref<2x32xf32, #tpu.memory_space<vmem>>, vector<2x32xf32>,
      %cst_48 = arith.constant 0.000000e+00 : f32
      %83 = vector.broadcast %cst_48 : f32 to vector<2x32xf32>
      %c0_49 = arith.constant 0 : index
      %c0_50 = arith.constant 0 : index
      %84 = vector.load %arg10[%c0_49, %c0_50] : memref<2x32xf32, #tpu.memory_space<vmem>>, vector<2x32xf32>
      tpu.vector_store %arg10[%c0_49, %c0_50], %83 {strides = array<i32>} : memref<2x32xf32, #tpu.memory_space<vmem>>, vector<2x32xf32>,
    } else {
    }
    %c0 = arith.constant 0 : index
    %c0_1 = arith.constant 0 : index
    %c0_2 = arith.constant 0 : index
    %3 = vector.load %arg1[%c0, %c0_1, %c0_2] : memref<1x2x128xf32, #tpu.memory_space<vmem>>, vector<1x2x128xf32>
    %4 = vector.shape_cast %3 : vector<1x2x128xf32> to vector<2x128xf32>
    %c0_3 = arith.constant 0 : index
    %c0_4 = arith.constant 0 : index
    %5 = vector.load %arg7[%c0_3, %c0_4] : memref<2x32xf32, #tpu.memory_space<vmem>>, vector<2x32xf32>
    %c0_5 = arith.constant 0 : index
    %c0_6 = arith.constant 0 : index
    %6 = vector.load %arg3[%c0_5, %c0_6] : memref<32x128xf32, #tpu.memory_space<vmem>>, vector<32x128xf32>
    %cst = arith.constant dense<0.000000e+00> : vector<2x128xf32>
    %7 = tpu.matmul %5, %6, %cst {dimension_numbers = #tpu.dot_dimension_numbers<[1], [0], [0], [1], [0, 0, 1, 1], [], []>} : vector<2x32xf32>, vector<32x128xf32>, vector<2x128xf32> -> vector<2x128xf32>
    %8 = arith.addf %4, %7 : vector<2x128xf32>
    %c0_7 = arith.constant 0 : index
    %c0_8 = arith.constant 0 : index
    %9 = vector.load %arg8[%c0_7, %c0_8] : memref<2x32xf32, #tpu.memory_space<vmem>>, vector<2x32xf32>
    %10 = vector.extract_strided_slice %8 {offsets = [0, 0], sizes = [2, 32], strides = [1, 1]} : vector<2x128xf32> to vector<2x32xf32>
    %11 = arith.negf %10 : vector<2x32xf32>
    %12 = math.exp %11 : vector<2x32xf32>
    %cst_9 = arith.constant 1.000000e+00 : f32
    %13 = vector.broadcast %cst_9 : f32 to vector<2x32xf32>
    %14 = arith.addf %13, %12 : vector<2x32xf32>
    %15 = arith.divf %13, %14 : vector<2x32xf32>
    %16 = vector.extract_strided_slice %8 {offsets = [0, 32], sizes = [2, 32], strides = [1, 1]} : vector<2x128xf32> to vector<2x32xf32>
    %17 = arith.negf %16 : vector<2x32xf32>
    %18 = math.exp %17 : vector<2x32xf32>
    %cst_10 = arith.constant 1.000000e+00 : f32
    %19 = vector.broadcast %cst_10 : f32 to vector<2x32xf32>
    %20 = arith.addf %19, %18 : vector<2x32xf32>
    %21 = arith.divf %19, %20 : vector<2x32xf32>
    %22 = vector.extract_strided_slice %8 {offsets = [0, 64], sizes = [2, 32], strides = [1, 1]} : vector<2x128xf32> to vector<2x32xf32>
    %23 = math.tanh %22 : vector<2x32xf32>
    %24 = vector.extract_strided_slice %8 {offsets = [0, 96], sizes = [2, 32], strides = [1, 1]} : vector<2x128xf32> to vector<2x32xf32>
    %25 = arith.negf %24 : vector<2x32xf32>
    %26 = math.exp %25 : vector<2x32xf32>
    %cst_11 = arith.constant 1.000000e+00 : f32
    %27 = vector.broadcast %cst_11 : f32 to vector<2x32xf32>
    %28 = arith.addf %27, %26 : vector<2x32xf32>
    %29 = arith.divf %27, %28 : vector<2x32xf32>
    %30 = arith.mulf %21, %9 : vector<2x32xf32>
    %31 = arith.mulf %15, %23 : vector<2x32xf32>
    %32 = arith.addf %30, %31 : vector<2x32xf32>
    %33 = math.tanh %32 : vector<2x32xf32>
    %34 = arith.mulf %29, %33 : vector<2x32xf32>
    %c0_12 = arith.constant 0 : index
    %c0_13 = arith.constant 0 : index
    %c0_14 = arith.constant 0 : index
    %35 = vector.load %arg2[%c0_12, %c0_13, %c0_14] : memref<1x2x128xf32, #tpu.memory_space<vmem>>, vector<1x2x128xf32>
    %36 = vector.shape_cast %35 : vector<1x2x128xf32> to vector<2x128xf32>
    %c0_15 = arith.constant 0 : index
    %c0_16 = arith.constant 0 : index
    %37 = vector.load %arg9[%c0_15, %c0_16] : memref<2x32xf32, #tpu.memory_space<vmem>>, vector<2x32xf32>
    %c0_17 = arith.constant 0 : index
    %c0_18 = arith.constant 0 : index
    %38 = vector.load %arg4[%c0_17, %c0_18] : memref<32x128xf32, #tpu.memory_space<vmem>>, vector<32x128xf32>
    %cst_19 = arith.constant dense<0.000000e+00> : vector<2x128xf32>
    %39 = tpu.matmul %37, %38, %cst_19 {dimension_numbers = #tpu.dot_dimension_numbers<[1], [0], [0], [1], [0, 0, 1, 1], [], []>} : vector<2x32xf32>, vector<32x128xf32>, vector<2x128xf32> -> vector<2x128xf32>
    %40 = arith.addf %36, %39 : vector<2x128xf32>
    %c0_20 = arith.constant 0 : index
    %c0_21 = arith.constant 0 : index
    %41 = vector.load %arg10[%c0_20, %c0_21] : memref<2x32xf32, #tpu.memory_space<vmem>>, vector<2x32xf32>
    %42 = vector.extract_strided_slice %40 {offsets = [0, 0], sizes = [2, 32], strides = [1, 1]} : vector<2x128xf32> to vector<2x32xf32>
    %43 = arith.negf %42 : vector<2x32xf32>
    %44 = math.exp %43 : vector<2x32xf32>
    %cst_22 = arith.constant 1.000000e+00 : f32
    %45 = vector.broadcast %cst_22 : f32 to vector<2x32xf32>
    %46 = arith.addf %45, %44 : vector<2x32xf32>
    %47 = arith.divf %45, %46 : vector<2x32xf32>
    %48 = vector.extract_strided_slice %40 {offsets = [0, 32], sizes = [2, 32], strides = [1, 1]} : vector<2x128xf32> to vector<2x32xf32>
    %49 = arith.negf %48 : vector<2x32xf32>
    %50 = math.exp %49 : vector<2x32xf32>
    %cst_23 = arith.constant 1.000000e+00 : f32
    %51 = vector.broadcast %cst_23 : f32 to vector<2x32xf32>
    %52 = arith.addf %51, %50 : vector<2x32xf32>
    %53 = arith.divf %51, %52 : vector<2x32xf32>
    %54 = vector.extract_strided_slice %40 {offsets = [0, 64], sizes = [2, 32], strides = [1, 1]} : vector<2x128xf32> to vector<2x32xf32>
    %55 = math.tanh %54 : vector<2x32xf32>
    %56 = vector.extract_strided_slice %40 {offsets = [0, 96], sizes = [2, 32], strides = [1, 1]} : vector<2x128xf32> to vector<2x32xf32>
    %57 = arith.negf %56 : vector<2x32xf32>
    %58 = math.exp %57 : vector<2x32xf32>
    %cst_24 = arith.constant 1.000000e+00 : f32
    %59 = vector.broadcast %cst_24 : f32 to vector<2x32xf32>
    %60 = arith.addf %59, %58 : vector<2x32xf32>
    %61 = arith.divf %59, %60 : vector<2x32xf32>
    %62 = arith.mulf %53, %41 : vector<2x32xf32>
    %63 = arith.mulf %47, %55 : vector<2x32xf32>
    %64 = arith.addf %62, %63 : vector<2x32xf32>
    %65 = math.tanh %64 : vector<2x32xf32>
    %66 = arith.mulf %61, %65 : vector<2x32xf32>
    %c0_25 = arith.constant 0 : index
    %c0_26 = arith.constant 0 : index
    %67 = vector.load %arg7[%c0_25, %c0_26] : memref<2x32xf32, #tpu.memory_space<vmem>>, vector<2x32xf32>
    tpu.vector_store %arg7[%c0_25, %c0_26], %34 {strides = array<i32>} : memref<2x32xf32, #tpu.memory_space<vmem>>, vector<2x32xf32>,
    %c0_27 = arith.constant 0 : index
    %c0_28 = arith.constant 0 : index
    %68 = vector.load %arg8[%c0_27, %c0_28] : memref<2x32xf32, #tpu.memory_space<vmem>>, vector<2x32xf32>
    tpu.vector_store %arg8[%c0_27, %c0_28], %32 {strides = array<i32>} : memref<2x32xf32, #tpu.memory_space<vmem>>, vector<2x32xf32>,
    %c0_29 = arith.constant 0 : index
    %c0_30 = arith.constant 0 : index
    %69 = vector.load %arg9[%c0_29, %c0_30] : memref<2x32xf32, #tpu.memory_space<vmem>>, vector<2x32xf32>
    tpu.vector_store %arg9[%c0_29, %c0_30], %66 {strides = array<i32>} : memref<2x32xf32, #tpu.memory_space<vmem>>, vector<2x32xf32>,
    %c0_31 = arith.constant 0 : index
    %c0_32 = arith.constant 0 : index
    %70 = vector.load %arg10[%c0_31, %c0_32] : memref<2x32xf32, #tpu.memory_space<vmem>>, vector<2x32xf32>
    tpu.vector_store %arg10[%c0_31, %c0_32], %64 {strides = array<i32>} : memref<2x32xf32, #tpu.memory_space<vmem>>, vector<2x32xf32>,
    %c0_33 = arith.constant 0 : index
    %c0_34 = arith.constant 0 : index
    %c0_35 = arith.constant 0 : index
    %71 = vector.load %arg5[%c0_33, %c0_34, %c0_35] : memref<1x2x32xf32, #tpu.memory_space<vmem>>, vector<1x2x32xf32>
    %72 = vector.shape_cast %71 : vector<1x2x32xf32> to vector<2x32xf32>
    %73 = vector.shape_cast %34 : vector<2x32xf32> to vector<1x2x32xf32>
    tpu.vector_store %arg5[%c0_33, %c0_34, %c0_35], %73 {strides = array<i32>} : memref<1x2x32xf32, #tpu.memory_space<vmem>>, vector<1x2x32xf32>,
    %c0_36 = arith.constant 0 : index
    %c0_37 = arith.constant 0 : index
    %c0_38 = arith.constant 0 : index
    %74 = vector.load %arg6[%c0_36, %c0_37, %c0_38] : memref<1x2x32xf32, #tpu.memory_space<vmem>>, vector<1x2x32xf32>
    %75 = vector.shape_cast %74 : vector<1x2x32xf32> to vector<2x32xf32>
    %76 = vector.shape_cast %66 : vector<2x32xf32> to vector<1x2x32xf32>
    tpu.vector_store %arg6[%c0_36, %c0_37, %c0_38], %76 {strides = array<i32>} : memref<1x2x32xf32, #tpu.memory_space<vmem>>, vector<1x2x32xf32>,
    return
  }
  func.func @transform_0(%arg0: i32) -> (i32, i32, i32) {
    %c0_i32 = arith.constant 0 : i32
    %c0_i32_0 = arith.constant 0 : i32
    %c0_i32_1 = arith.constant 0 : i32
    return %arg0, %c0_i32, %c0_i32_0 : i32, i32, i32
  }
  func.func @transform_1(%arg0: i32) -> (i32, i32, i32) {
    %c3_i32 = arith.constant 3 : i32
    %0 = arith.subi %c3_i32, %arg0 : i32
    %c0_i32 = arith.constant 0 : i32
    %c1_i32 = arith.constant 1 : i32
    %c0_i32_0 = arith.constant 0 : i32
    return %0, %c0_i32, %c1_i32 : i32, i32, i32
  }
  func.func @transform_2(%arg0: i32) -> (i32, i32) {
    %c0_i32 = arith.constant 0 : i32
    %c0_i32_0 = arith.constant 0 : i32
    %c0_i32_1 = arith.constant 0 : i32
    return %c0_i32, %c0_i32_0 : i32, i32
  }
  func.func @transform_3(%arg0: i32) -> (i32, i32) {
    %c0_i32 = arith.constant 0 : i32
    %c0_i32_0 = arith.constant 0 : i32
    %c0_i32_1 = arith.constant 0 : i32
    return %c0_i32, %c0_i32_0 : i32, i32
  }
  func.func @transform_4(%arg0: i32) -> (i32, i32, i32) {
    %c0_i32 = arith.constant 0 : i32
    %c0_i32_0 = arith.constant 0 : i32
    %c0_i32_1 = arith.constant 0 : i32
    return %arg0, %c0_i32, %c0_i32_0 : i32, i32, i32
  }
  func.func @transform_5(%arg0: i32) -> (i32, i32, i32) {
    %c3_i32 = arith.constant 3 : i32
    %0 = arith.subi %c3_i32, %arg0 : i32
    %c0_i32 = arith.constant 0 : i32
    %c0_i32_0 = arith.constant 0 : i32
    %c0_i32_1 = arith.constant 0 : i32
    return %0, %c0_i32, %c0_i32_0 : i32, i32, i32
  }
}

module attributes {stable_mosaic.version = 11 : i64} {
  func.func @_dense_kernel(%arg0: i32, %arg1: memref<8x64xbf16, #tpu.memory_space<vmem>>, %arg2: memref<64x256xbf16, #tpu.memory_space<vmem>>, %arg3: memref<1x256xf32, #tpu.memory_space<vmem>>, %arg4: memref<8x256xf32, #tpu.memory_space<vmem>>) attributes {dimension_semantics = [#tpu.dimension_semantics<arbitrary>], iteration_bounds = array<i64: 1>, scalar_prefetch = 0 : i64, scratch_operands = 0 : i64, tpu.core_type = #tpu.core_type<tc>, window_params = [{pipeline_mode = #tpu.pipeline_mode<synchronous>, transform_indices = @transform_0, window_bounds = array<i64: 8, 64>}, {pipeline_mode = #tpu.pipeline_mode<synchronous>, transform_indices = @transform_1, window_bounds = array<i64: 64, 256>}, {pipeline_mode = #tpu.pipeline_mode<synchronous>, transform_indices = @transform_2, window_bounds = array<i64: 1, 256>}, {pipeline_mode = #tpu.pipeline_mode<synchronous>, transform_indices = @transform_3, window_bounds = array<i64: 8, 256>}]} {
    %c0 = arith.constant 0 : index
    %c0_0 = arith.constant 0 : index
    %0 = vector.load %arg1[%c0, %c0_0] : memref<8x64xbf16, #tpu.memory_space<vmem>>, vector<8x64xbf16>
    %c0_1 = arith.constant 0 : index
    %c0_2 = arith.constant 0 : index
    %1 = vector.load %arg2[%c0_1, %c0_2] : memref<64x256xbf16, #tpu.memory_space<vmem>>, vector<64x256xbf16>
    %cst = arith.constant dense<0.000000e+00> : vector<8x256xf32>
    %2 = tpu.matmul %0, %1, %cst {dimension_numbers = #tpu.dot_dimension_numbers<[1], [0], [0], [1], [0, 0, 1, 1], [], []>} : vector<8x64xbf16>, vector<64x256xbf16>, vector<8x256xf32> -> vector<8x256xf32>
    %c0_3 = arith.constant 0 : index
    %c0_4 = arith.constant 0 : index
    %3 = vector.load %arg3[%c0_3, %c0_4] : memref<1x256xf32, #tpu.memory_space<vmem>>, vector<1x256xf32>
    %4 = vector.broadcast %3 : vector<1x256xf32> to vector<8x256xf32>
    %5 = arith.addf %2, %4 : vector<8x256xf32>
    %c0_5 = arith.constant 0 : index
    %c0_6 = arith.constant 0 : index
    %6 = vector.load %arg4[%c0_5, %c0_6] : memref<8x256xf32, #tpu.memory_space<vmem>>, vector<8x256xf32>
    tpu.vector_store %arg4[%c0_5, %c0_6], %5 {strides = array<i32>} : memref<8x256xf32, #tpu.memory_space<vmem>>, vector<8x256xf32>,
    return
  }
  func.func @transform_0(%arg0: i32) -> (i32, i32) {
    %c0_i32 = arith.constant 0 : i32
    %c0_i32_0 = arith.constant 0 : i32
    %c0_i32_1 = arith.constant 0 : i32
    return %c0_i32, %c0_i32_0 : i32, i32
  }
  func.func @transform_1(%arg0: i32) -> (i32, i32) {
    %c0_i32 = arith.constant 0 : i32
    %c0_i32_0 = arith.constant 0 : i32
    %c0_i32_1 = arith.constant 0 : i32
    return %c0_i32, %c0_i32_0 : i32, i32
  }
  func.func @transform_2(%arg0: i32) -> (i32, i32) {
    %c0_i32 = arith.constant 0 : i32
    %c0_i32_0 = arith.constant 0 : i32
    %c0_i32_1 = arith.constant 0 : i32
    return %c0_i32, %c0_i32_0 : i32, i32
  }
  func.func @transform_3(%arg0: i32) -> (i32, i32) {
    %c0_i32 = arith.constant 0 : i32
    %c0_i32_0 = arith.constant 0 : i32
    %c0_i32_1 = arith.constant 0 : i32
    return %c0_i32, %c0_i32_0 : i32, i32
  }
}

module attributes {stable_mosaic.version = 11 : i64} {
  func.func @_bilstm_last_kernel(%arg0: i32, %arg1: memref<1x2x128xf32, #tpu.memory_space<vmem>>, %arg2: memref<1x2x128xf32, #tpu.memory_space<vmem>>, %arg3: memref<32x128xf32, #tpu.memory_space<vmem>>, %arg4: memref<2x64xf32, #tpu.memory_space<vmem>>, %arg5: memref<2x32xf32, #tpu.memory_space<vmem>>, %arg6: memref<2x32xf32, #tpu.memory_space<vmem>>) attributes {dimension_semantics = [#tpu.dimension_semantics<arbitrary>], iteration_bounds = array<i64: 4>, scalar_prefetch = 0 : i64, scratch_operands = 2 : i64, tpu.core_type = #tpu.core_type<tc>, window_params = [{transform_indices = @transform_0, window_bounds = array<i64: 1, 2, 128>}, {transform_indices = @transform_1, window_bounds = array<i64: 1, 2, 128>}, {pipeline_mode = #tpu.pipeline_mode<synchronous>, transform_indices = @transform_2, window_bounds = array<i64: 32, 128>}, {pipeline_mode = #tpu.pipeline_mode<synchronous>, transform_indices = @transform_3, window_bounds = array<i64: 2, 64>}]} {
    %c0_i32 = arith.constant 0 : i32
    %0 = arith.cmpi eq, %arg0, %c0_i32 : i32
    %1 = arith.extui %0 : i1 to i32
    %c0_i32_0 = arith.constant 0 : i32
    %2 = arith.cmpi ne, %1, %c0_i32_0 : i32
    scf.if %2 {
      %cst_17 = arith.constant 0.000000e+00 : f32
      %40 = vector.broadcast %cst_17 : f32 to vector<2x32xf32>
      %c0_18 = arith.constant 0 : index
      %c0_19 = arith.constant 0 : index
      %41 = vector.load %arg5[%c0_18, %c0_19] : memref<2x32xf32, #tpu.memory_space<vmem>>, vector<2x32xf32>
      tpu.vector_store %arg5[%c0_18, %c0_19], %40 {strides = array<i32>} : memref<2x32xf32, #tpu.memory_space<vmem>>, vector<2x32xf32>,
      %cst_20 = arith.constant 0.000000e+00 : f32
      %42 = vector.broadcast %cst_20 : f32 to vector<2x32xf32>
      %c0_21 = arith.constant 0 : index
      %c0_22 = arith.constant 0 : index
      %43 = vector.load %arg6[%c0_21, %c0_22] : memref<2x32xf32, #tpu.memory_space<vmem>>, vector<2x32xf32>
      tpu.vector_store %arg6[%c0_21, %c0_22], %42 {strides = array<i32>} : memref<2x32xf32, #tpu.memory_space<vmem>>, vector<2x32xf32>,
      %cst_23 = arith.constant 0.000000e+00 : f32
      %44 = vector.broadcast %cst_23 : f32 to vector<2x32xf32>
      %c0_24 = arith.constant 0 : index
      %c0_25 = arith.constant 0 : index
      %c0_26 = arith.constant 0 : index
      %45 = vector.load %arg2[%c0_24, %c0_25, %c0_26] : memref<1x2x128xf32, #tpu.memory_space<vmem>>, vector<1x2x128xf32>
      %46 = vector.shape_cast %45 : vector<1x2x128xf32> to vector<2x128xf32>
      %47 = vector.extract_strided_slice %46 {offsets = [0, 0], sizes = [2, 32], strides = [1, 1]} : vector<2x128xf32> to vector<2x32xf32>
      %48 = arith.negf %47 : vector<2x32xf32>
      %49 = math.exp %48 : vector<2x32xf32>
      %cst_27 = arith.constant 1.000000e+00 : f32
      %50 = vector.broadcast %cst_27 : f32 to vector<2x32xf32>
      %51 = arith.addf %50, %49 : vector<2x32xf32>
      %52 = arith.divf %50, %51 : vector<2x32xf32>
      %53 = vector.extract_strided_slice %46 {offsets = [0, 32], sizes = [2, 32], strides = [1, 1]} : vector<2x128xf32> to vector<2x32xf32>
      %54 = arith.negf %53 : vector<2x32xf32>
      %55 = math.exp %54 : vector<2x32xf32>
      %cst_28 = arith.constant 1.000000e+00 : f32
      %56 = vector.broadcast %cst_28 : f32 to vector<2x32xf32>
      %57 = arith.addf %56, %55 : vector<2x32xf32>
      %58 = arith.divf %56, %57 : vector<2x32xf32>
      %59 = vector.extract_strided_slice %46 {offsets = [0, 64], sizes = [2, 32], strides = [1, 1]} : vector<2x128xf32> to vector<2x32xf32>
      %60 = math.tanh %59 : vector<2x32xf32>
      %61 = vector.extract_strided_slice %46 {offsets = [0, 96], sizes = [2, 32], strides = [1, 1]} : vector<2x128xf32> to vector<2x32xf32>
      %62 = arith.negf %61 : vector<2x32xf32>
      %63 = math.exp %62 : vector<2x32xf32>
      %cst_29 = arith.constant 1.000000e+00 : f32
      %64 = vector.broadcast %cst_29 : f32 to vector<2x32xf32>
      %65 = arith.addf %64, %63 : vector<2x32xf32>
      %66 = arith.divf %64, %65 : vector<2x32xf32>
      %67 = arith.mulf %58, %44 : vector<2x32xf32>
      %68 = arith.mulf %52, %60 : vector<2x32xf32>
      %69 = arith.addf %67, %68 : vector<2x32xf32>
      %70 = math.tanh %69 : vector<2x32xf32>
      %71 = arith.mulf %66, %70 : vector<2x32xf32>
      %c0_30 = arith.constant 0 : index
      %c32 = arith.constant 32 : index
      %72 = vector.load %arg4[%c0_30, %c32] : memref<2x64xf32, #tpu.memory_space<vmem>>, vector<2x32xf32>
      tpu.vector_store %arg4[%c0_30, %c32], %71 {strides = array<i32>} : memref<2x64xf32, #tpu.memory_space<vmem>>, vector<2x32xf32>,
    } else {
    }
    %c0 = arith.constant 0 : index
    %c0_1 = arith.constant 0 : index
    %c0_2 = arith.constant 0 : index
    %3 = vector.load %arg1[%c0, %c0_1, %c0_2] : memref<1x2x128xf32, #tpu.memory_space<vmem>>, vector<1x2x128xf32>
    %4 = vector.shape_cast %3 : vector<1x2x128xf32> to vector<2x128xf32>
    %c0_3 = arith.constant 0 : index
    %c0_4 = arith.constant 0 : index
    %5 = vector.load %arg5[%c0_3, %c0_4] : memref<2x32xf32, #tpu.memory_space<vmem>>, vector<2x32xf32>
    %c0_5 = arith.constant 0 : index
    %c0_6 = arith.constant 0 : index
    %6 = vector.load %arg3[%c0_5, %c0_6] : memref<32x128xf32, #tpu.memory_space<vmem>>, vector<32x128xf32>
    %cst = arith.constant dense<0.000000e+00> : vector<2x128xf32>
    %7 = tpu.matmul %5, %6, %cst {dimension_numbers = #tpu.dot_dimension_numbers<[1], [0], [0], [1], [0, 0, 1, 1], [], []>} : vector<2x32xf32>, vector<32x128xf32>, vector<2x128xf32> -> vector<2x128xf32>
    %8 = arith.addf %4, %7 : vector<2x128xf32>
    %c0_7 = arith.constant 0 : index
    %c0_8 = arith.constant 0 : index
    %9 = vector.load %arg6[%c0_7, %c0_8] : memref<2x32xf32, #tpu.memory_space<vmem>>, vector<2x32xf32>
    %10 = vector.extract_strided_slice %8 {offsets = [0, 0], sizes = [2, 32], strides = [1, 1]} : vector<2x128xf32> to vector<2x32xf32>
    %11 = arith.negf %10 : vector<2x32xf32>
    %12 = math.exp %11 : vector<2x32xf32>
    %cst_9 = arith.constant 1.000000e+00 : f32
    %13 = vector.broadcast %cst_9 : f32 to vector<2x32xf32>
    %14 = arith.addf %13, %12 : vector<2x32xf32>
    %15 = arith.divf %13, %14 : vector<2x32xf32>
    %16 = vector.extract_strided_slice %8 {offsets = [0, 32], sizes = [2, 32], strides = [1, 1]} : vector<2x128xf32> to vector<2x32xf32>
    %17 = arith.negf %16 : vector<2x32xf32>
    %18 = math.exp %17 : vector<2x32xf32>
    %cst_10 = arith.constant 1.000000e+00 : f32
    %19 = vector.broadcast %cst_10 : f32 to vector<2x32xf32>
    %20 = arith.addf %19, %18 : vector<2x32xf32>
    %21 = arith.divf %19, %20 : vector<2x32xf32>
    %22 = vector.extract_strided_slice %8 {offsets = [0, 64], sizes = [2, 32], strides = [1, 1]} : vector<2x128xf32> to vector<2x32xf32>
    %23 = math.tanh %22 : vector<2x32xf32>
    %24 = vector.extract_strided_slice %8 {offsets = [0, 96], sizes = [2, 32], strides = [1, 1]} : vector<2x128xf32> to vector<2x32xf32>
    %25 = arith.negf %24 : vector<2x32xf32>
    %26 = math.exp %25 : vector<2x32xf32>
    %cst_11 = arith.constant 1.000000e+00 : f32
    %27 = vector.broadcast %cst_11 : f32 to vector<2x32xf32>
    %28 = arith.addf %27, %26 : vector<2x32xf32>
    %29 = arith.divf %27, %28 : vector<2x32xf32>
    %30 = arith.mulf %21, %9 : vector<2x32xf32>
    %31 = arith.mulf %15, %23 : vector<2x32xf32>
    %32 = arith.addf %30, %31 : vector<2x32xf32>
    %33 = math.tanh %32 : vector<2x32xf32>
    %34 = arith.mulf %29, %33 : vector<2x32xf32>
    %c0_12 = arith.constant 0 : index
    %c0_13 = arith.constant 0 : index
    %35 = vector.load %arg5[%c0_12, %c0_13] : memref<2x32xf32, #tpu.memory_space<vmem>>, vector<2x32xf32>
    tpu.vector_store %arg5[%c0_12, %c0_13], %34 {strides = array<i32>} : memref<2x32xf32, #tpu.memory_space<vmem>>, vector<2x32xf32>,
    %c0_14 = arith.constant 0 : index
    %c0_15 = arith.constant 0 : index
    %36 = vector.load %arg6[%c0_14, %c0_15] : memref<2x32xf32, #tpu.memory_space<vmem>>, vector<2x32xf32>
    tpu.vector_store %arg6[%c0_14, %c0_15], %32 {strides = array<i32>} : memref<2x32xf32, #tpu.memory_space<vmem>>, vector<2x32xf32>,
    %c3_i32 = arith.constant 3 : i32
    %37 = arith.cmpi eq, %arg0, %c3_i32 : i32
    %38 = arith.extui %37 : i1 to i32
    %c0_i32_16 = arith.constant 0 : i32
    %39 = arith.cmpi ne, %38, %c0_i32_16 : i32
    scf.if %39 {
      %c0_17 = arith.constant 0 : index
      %c0_18 = arith.constant 0 : index
      %40 = vector.load %arg4[%c0_17, %c0_18] : memref<2x64xf32, #tpu.memory_space<vmem>>, vector<2x32xf32>
      tpu.vector_store %arg4[%c0_17, %c0_18], %34 {strides = array<i32>} : memref<2x64xf32, #tpu.memory_space<vmem>>, vector<2x32xf32>,
    } else {
    }
    return
  }
  func.func @transform_0(%arg0: i32) -> (i32, i32, i32) {
    %c0_i32 = arith.constant 0 : i32
    %c0_i32_0 = arith.constant 0 : i32
    %c0_i32_1 = arith.constant 0 : i32
    return %arg0, %c0_i32, %c0_i32_0 : i32, i32, i32
  }
  func.func @transform_1(%arg0: i32) -> (i32, i32, i32) {
    %c3_i32 = arith.constant 3 : i32
    %c0_i32 = arith.constant 0 : i32
    %c1_i32 = arith.constant 1 : i32
    %c0_i32_0 = arith.constant 0 : i32
    return %c3_i32, %c0_i32, %c1_i32 : i32, i32, i32
  }
  func.func @transform_2(%arg0: i32) -> (i32, i32) {
    %c0_i32 = arith.constant 0 : i32
    %c0_i32_0 = arith.constant 0 : i32
    %c0_i32_1 = arith.constant 0 : i32
    return %c0_i32, %c0_i32_0 : i32, i32
  }
  func.func @transform_3(%arg0: i32) -> (i32, i32) {
    %c0_i32 = arith.constant 0 : i32
    %c0_i32_0 = arith.constant 0 : i32
    %c0_i32_1 = arith.constant 0 : i32
    return %c0_i32, %c0_i32_0 : i32, i32
  }
}

module attributes {stable_mosaic.version = 11 : i64} {
  func.func @_fc_tail_kernel(%arg0: i32, %arg1: memref<2x64xf32, #tpu.memory_space<vmem>>, %arg2: memref<64x128xf32, #tpu.memory_space<vmem>>, %arg3: memref<1x128xf32, #tpu.memory_space<vmem>>, %arg4: memref<128x2xf32, #tpu.memory_space<vmem>>, %arg5: memref<1x2xf32, #tpu.memory_space<vmem>>, %arg6: memref<2x2xf32, #tpu.memory_space<vmem>>) attributes {dimension_semantics = [#tpu.dimension_semantics<arbitrary>], iteration_bounds = array<i64: 1>, scalar_prefetch = 0 : i64, scratch_operands = 0 : i64, tpu.core_type = #tpu.core_type<tc>, window_params = [{pipeline_mode = #tpu.pipeline_mode<synchronous>, transform_indices = @transform_0, window_bounds = array<i64: 2, 64>}, {pipeline_mode = #tpu.pipeline_mode<synchronous>, transform_indices = @transform_1, window_bounds = array<i64: 64, 128>}, {pipeline_mode = #tpu.pipeline_mode<synchronous>, transform_indices = @transform_2, window_bounds = array<i64: 1, 128>}, {pipeline_mode = #tpu.pipeline_mode<synchronous>, transform_indices = @transform_3, window_bounds = array<i64: 128, 2>}, {pipeline_mode = #tpu.pipeline_mode<synchronous>, transform_indices = @transform_4, window_bounds = array<i64: 1, 2>}, {pipeline_mode = #tpu.pipeline_mode<synchronous>, transform_indices = @transform_5, window_bounds = array<i64: 2, 2>}]} {
    %c0 = arith.constant 0 : index
    %c0_0 = arith.constant 0 : index
    %0 = vector.load %arg1[%c0, %c0_0] : memref<2x64xf32, #tpu.memory_space<vmem>>, vector<2x64xf32>
    %c0_1 = arith.constant 0 : index
    %c0_2 = arith.constant 0 : index
    %1 = vector.load %arg2[%c0_1, %c0_2] : memref<64x128xf32, #tpu.memory_space<vmem>>, vector<64x128xf32>
    %cst = arith.constant dense<0.000000e+00> : vector<2x128xf32>
    %2 = tpu.matmul %0, %1, %cst {dimension_numbers = #tpu.dot_dimension_numbers<[1], [0], [0], [1], [0, 0, 1, 1], [], []>} : vector<2x64xf32>, vector<64x128xf32>, vector<2x128xf32> -> vector<2x128xf32>
    %c0_3 = arith.constant 0 : index
    %c0_4 = arith.constant 0 : index
    %3 = vector.load %arg3[%c0_3, %c0_4] : memref<1x128xf32, #tpu.memory_space<vmem>>, vector<1x128xf32>
    %4 = vector.broadcast %3 : vector<1x128xf32> to vector<2x128xf32>
    %5 = arith.addf %2, %4 : vector<2x128xf32>
    %c0_5 = arith.constant 0 : index
    %c0_6 = arith.constant 0 : index
    %6 = vector.load %arg4[%c0_5, %c0_6] : memref<128x2xf32, #tpu.memory_space<vmem>>, vector<128x2xf32>
    %cst_7 = arith.constant dense<0.000000e+00> : vector<2x2xf32>
    %7 = tpu.matmul %5, %6, %cst_7 {dimension_numbers = #tpu.dot_dimension_numbers<[1], [0], [0], [1], [0, 0, 1, 1], [], []>} : vector<2x128xf32>, vector<128x2xf32>, vector<2x2xf32> -> vector<2x2xf32>
    %c0_8 = arith.constant 0 : index
    %c0_9 = arith.constant 0 : index
    %8 = vector.load %arg5[%c0_8, %c0_9] : memref<1x2xf32, #tpu.memory_space<vmem>>, vector<1x2xf32>
    %9 = vector.broadcast %8 : vector<1x2xf32> to vector<2x2xf32>
    %10 = arith.addf %7, %9 : vector<2x2xf32>
    %c0_10 = arith.constant 0 : index
    %c0_11 = arith.constant 0 : index
    %11 = vector.load %arg6[%c0_10, %c0_11] : memref<2x2xf32, #tpu.memory_space<vmem>>, vector<2x2xf32>
    tpu.vector_store %arg6[%c0_10, %c0_11], %10 {strides = array<i32>} : memref<2x2xf32, #tpu.memory_space<vmem>>, vector<2x2xf32>,
    return
  }
  func.func @transform_0(%arg0: i32) -> (i32, i32) {
    %c0_i32 = arith.constant 0 : i32
    %c0_i32_0 = arith.constant 0 : i32
    %c0_i32_1 = arith.constant 0 : i32
    return %c0_i32, %c0_i32_0 : i32, i32
  }
  func.func @transform_1(%arg0: i32) -> (i32, i32) {
    %c0_i32 = arith.constant 0 : i32
    %c0_i32_0 = arith.constant 0 : i32
    %c0_i32_1 = arith.constant 0 : i32
    return %c0_i32, %c0_i32_0 : i32, i32
  }
  func.func @transform_2(%arg0: i32) -> (i32, i32) {
    %c0_i32 = arith.constant 0 : i32
    %c0_i32_0 = arith.constant 0 : i32
    %c0_i32_1 = arith.constant 0 : i32
    return %c0_i32, %c0_i32_0 : i32, i32
  }
  func.func @transform_3(%arg0: i32) -> (i32, i32) {
    %c0_i32 = arith.constant 0 : i32
    %c0_i32_0 = arith.constant 0 : i32
    %c0_i32_1 = arith.constant 0 : i32
    return %c0_i32, %c0_i32_0 : i32, i32
  }
  func.func @transform_4(%arg0: i32) -> (i32, i32) {
    %c0_i32 = arith.constant 0 : i32
    %c0_i32_0 = arith.constant 0 : i32
    %c0_i32_1 = arith.constant 0 : i32
    return %c0_i32, %c0_i32_0 : i32, i32
  }
  func.func @transform_5(%arg0: i32) -> (i32, i32) {
    %c0_i32 = arith.constant 0 : i32
    %c0_i32_0 = arith.constant 0 : i32
    %c0_i32_1 = arith.constant 0 : i32
    return %c0_i32, %c0_i32_0 : i32, i32
  }
}

</mosaic_0001>

<llo_original>
// kernel: cnn_lstm_av_forward.7
$region0: #{cnn_lstm_av_forward.7}
  #allocation0 [shape = 'u32[]', space=smem, size = 0x4, offset = 0x4, fixed_abs, tag = 'smem constant byte address 0x4 - core index']
  #allocation1 [shape = 'u32[72,128]{1,0:T(1,128)}', space=vmem, size = 0x9000, scoped, tag = 'internal scratch']
  %s0 = inlined_call_operand.vmem [shape: bf16[8,27], index: 0, kind: input, shape index: {}]
  %s1 = inlined_call_operand.vmem [shape: f32[8,1], index: 1, kind: input, shape index: {}]
  %s2 = inlined_call_operand.vmem [shape: bf16[27,2048], index: 2, kind: input, shape index: {}]
  %s3 = inlined_call_operand.vmem [shape: f32[8,2048], index: 3, kind: output, shape index: {}]
  %s4 = sld [smem:[#allocation0]]
  $region68: #{cnn_lstm_av_forward.7} parent=0
    _
  %s6 = ssub.s32 1, %s4
  %s7 = scalar_select 0, %s6, %s4
  $region1: #{cnn_lstm_av_forward.7} parent=0
    #allocation2 [shape = 'u8[65536]{0}', space=vmem, size = 0x10000, scoped, tag = 'input window, operand 2']
    loop: start=0, step=1, limit=6
    $region2: #{cnn_lstm_av_forward.7} parent=1 // loop_pre_header
      _
    $region3: #{cnn_lstm_av_forward.7} parent=1 // loop_header
      %s9 = sphi 0, %s13
      %p10 = scmp.ge.s32.totalorder %s9, 6
      %s17 = sphi 0, %s17
      %s19 = sphi 0, %s17
      %s20 = sphi 0, %s19
      %s34 = sphi 0, %s20
      %s38 = sphi 0, %s38
      %s40 = sphi 0, %s38
      %s41 = sphi 0, %s40
      %s55 = sphi 0, %s41
      %s61 = sphi 0, %s63
      %s64 = sphi 0, %s61
      %s65 = sphi 0, %s64
      %s81 = sphi 0, %s65
      %s87 = sphi 0, %s89
      %s90 = sphi 0, %s87
      %s91 = sphi 0, %s90
      %s107 = sphi 0, %s91
    $region4: #{cnn_lstm_av_forward.7} parent=1 // loop_header_branch
      %12 = sbr.rel (%p10) target = $region8
    $region5: #{cnn_lstm_av_forward.7} parent=1 // loop_body
      %s14 = ssub.s32 %s9, 1
      %s15 = ssub.s32 %s9, 2
      %s16 = sadd.s32 %s9, 1
      %s18 = sadd.s32 %s17, 1
      %p21 = scmp.eq.s32.totalorder %s9, 3
      %p22 = scmp.ne.s32.totalorder %s17, %s19
      %p23 = scmp.eq.s32.totalorder %s9, 0
      %p24 = por %p22, %p23
      %p25 = scmp.ne.s32.totalorder %s17, %s19
      %p26 = scmp.eq.s32.totalorder %s14, 3
      %p27 = por %p25, %p26
      %p28 = scmp.ne.s32.totalorder %s19, %s20
      %p29 = scmp.eq.s32.totalorder %s14, 0
      %p30 = por %p28, %p29
      %p31 = scmp.ne.s32.totalorder %s19, %s20
      %p32 = scmp.eq.s32.totalorder %s15, 3
      %p33 = por %p31, %p32
      %p35 = scmp.ne.s32.totalorder %s20, %s34
      %p36 = scmp.eq.s32.totalorder %s15, 0
      %p37 = por %p35, %p36
      %s39 = sadd.s32 %s38, 1
      %p42 = scmp.eq.s32.totalorder %s9, 3
      %p43 = scmp.ne.s32.totalorder %s38, %s40
      %p44 = scmp.eq.s32.totalorder %s9, 0
      %p45 = por %p43, %p44
      %p46 = scmp.ne.s32.totalorder %s38, %s40
      %p47 = scmp.eq.s32.totalorder %s14, 3
      %p48 = por %p46, %p47
      %p49 = scmp.ne.s32.totalorder %s40, %s41
      %p50 = scmp.eq.s32.totalorder %s14, 0
      %p51 = por %p49, %p50
      %p52 = scmp.ne.s32.totalorder %s40, %s41
      %p53 = scmp.eq.s32.totalorder %s15, 3
      %p54 = por %p52, %p53
      %p56 = scmp.ne.s32.totalorder %s41, %s55
      %p57 = scmp.eq.s32.totalorder %s15, 0
      %p58 = por %p56, %p57
      %s59 = ssub.s32 %s9, %s16
      %p60 = scmp.eq.s32.totalorder %s59, 0
      %s62 = sadd.s32 %s61, 1
      %s63 = scalar_select %p60, %s61, %s62
      %p66 = pneg %p60
      %p67 = scmp.eq.s32.totalorder %s9, 3
      %p68 = por %p66, %p67
      %p69 = scmp.ne.s32.totalorder %s61, %s64
      %p70 = scmp.eq.s32.totalorder %s9, 0
      %p71 = por %p69, %p70
      %p72 = scmp.ne.s32.totalorder %s61, %s64
      %p73 = scmp.eq.s32.totalorder %s14, 3
      %p74 = por %p72, %p73
      %p75 = scmp.ne.s32.totalorder %s64, %s65
      %p76 = scmp.eq.s32.totalorder %s14, 0
      %p77 = por %p75, %p76
      %p78 = scmp.ne.s32.totalorder %s64, %s65
      %p79 = scmp.eq.s32.totalorder %s15, 3
      %p80 = por %p78, %p79
      %p82 = scmp.ne.s32.totalorder %s65, %s81
      %p83 = scmp.eq.s32.totalorder %s15, 0
      %p84 = por %p82, %p83
      %s85 = ssub.s32 %s9, %s16
      %p86 = scmp.eq.s32.totalorder %s85, 0
      %s88 = sadd.s32 %s87, 1
      %s89 = scalar_select %p86, %s87, %s88
      %p92 = pneg %p86
      %p93 = scmp.eq.s32.totalorder %s9, 3
      %p94 = por %p92, %p93
      %p95 = scmp.ne.s32.totalorder %s87, %s90
      %p96 = scmp.eq.s32.totalorder %s9, 0
      %p97 = por %p95, %p96
      %p98 = scmp.ne.s32.totalorder %s87, %s90
      %p99 = scmp.eq.s32.totalorder %s14, 3
      %p100 = por %p98, %p99
      %p101 = scmp.ne.s32.totalorder %s90, %s91
      %p102 = scmp.eq.s32.totalorder %s14, 0
      %p103 = por %p101, %p102
      %p104 = scmp.ne.s32.totalorder %s90, %s91
      %p105 = scmp.eq.s32.totalorder %s15, 3
      %p106 = por %p104, %p105
      %p108 = scmp.ne.s32.totalorder %s91, %s107
      %p109 = scmp.eq.s32.totalorder %s15, 0
      %p110 = por %p108, %p109
      %p111 = scmp.le.s32.totalorder 1, %s9
      %p112 = scmp.lt.s32.totalorder %s9, 5
      %p113 = pnand %p111, %p112
      %p114 = pneg %p113
      // Predicated region
      $region9: #{cnn_lstm_av_forward.7} parent=5 // pred_check
        _
      $region10: #{cnn_lstm_av_forward.7} parent=5 // pred_check_branch
        %116 = sbr.rel (%p113) target = $region12
      $region11: #{cnn_lstm_av_forward.7} parent=5 // pred_region
        %s117 = ssub.s32 %s9, 1
        // Predicated region
        $region13: #{cnn_lstm_av_forward.7} parent=11 // pred_check
          %p118 = pneg %p30
        $region14: #{cnn_lstm_av_forward.7} parent=11 // pred_check_branch
          %120 = sbr.rel (%p118) target = $region16
        $region15: #{cnn_lstm_av_forward.7} parent=11 // pred_region
          _
        $region16: #{cnn_lstm_av_forward.7} parent=11 // pred_fallthru
          _
        // Predicated region
        $region17: #{cnn_lstm_av_forward.7} parent=11 // pred_check
          %p121 = pneg %p51
        $region18: #{cnn_lstm_av_forward.7} parent=11 // pred_check_branch
          %123 = sbr.rel (%p121) target = $region20
        $region19: #{cnn_lstm_av_forward.7} parent=11 // pred_region
          _
        $region20: #{cnn_lstm_av_forward.7} parent=11 // pred_fallthru
          _
      $region12: #{cnn_lstm_av_forward.7} parent=5 // pred_fallthru
        _
      %p124 = scmp.lt.s32.totalorder %s9, 4
      // Predicated region
      $region21: #{cnn_lstm_av_forward.7} parent=5 // pred_check
        %p125 = pneg %p124
      $region22: #{cnn_lstm_av_forward.7} parent=5 // pred_check_branch
        %127 = sbr.rel (%p125) target = $region24
      $region23: #{cnn_lstm_av_forward.7} parent=5 // pred_region
        // Predicated region
        $region25: #{cnn_lstm_av_forward.7} parent=23 // pred_check
          %p128 = pneg %p71
        $region26: #{cnn_lstm_av_forward.7} parent=23 // pred_check_branch
          %130 = sbr.rel (%p128) target = $region28
        $region27: #{cnn_lstm_av_forward.7} parent=23 // pred_region
          %s131 = sand.u32 %s61, 1
          %s132 = sand.u32 %s61, 1
          %s133 = smul.addr %s132, 64
          %s134 = scalar_lea.vmem [#allocation2], %s133
          %s135 = smul.u32 4, %s9
          %s136 = smul.addr %s135, 4
          %s137 = scalar_lea.vmem %s2, %s136
          // Predicated region
          $region29: #{cnn_lstm_av_forward.7} parent=27 // pred_check
            _
          $region30: #{cnn_lstm_av_forward.7} parent=27 // pred_check_branch
            %139 = sbr.rel (0) target = $region32
          $region31: #{cnn_lstm_av_forward.7} parent=27 // pred_region
            // Predicated region
            $region33: #{cnn_lstm_av_forward.7} parent=31 // pred_check
              _
            $region34: #{cnn_lstm_av_forward.7} parent=31 // pred_check_branch
              %141 = sbr.rel (0) target = $region36
            $region35: #{cnn_lstm_av_forward.7} parent=31 // pred_region
              loop: start=0, step=1, limit=1
              $region37: #{cnn_lstm_av_forward.7} parent=35 // loop_pre_header
                _
              $region38: #{cnn_lstm_av_forward.7} parent=35 // loop_header
                %s143 = sphi 0, %s147
                %p144 = scmp.ge.s32.totalorder %s143, 1
                %s148 = sphi %s137, %s137
                %s149 = sphi %s134, %s134
              $region39: #{cnn_lstm_av_forward.7} parent=35 // loop_header_branch
                %146 = sbr.rel (%p144) target = $region43
              $region40: #{cnn_lstm_av_forward.7} parent=35 // loop_body
                %v150 = vld [vmem:[%s148] sm:$0xff]
                %151 = vst [vmem:[%s149] sm:$0xff] %v150
                %v152 = vld [vmem:[%s148 + $0x8] sm:$0xff]
                %153 = vst [vmem:[%s149 + $0x8] sm:$0xff] %v152
                %v154 = vld [vmem:[%s148 + $0x40] sm:$0xff]
                %155 = vst [vmem:[%s149 + $0x10] sm:$0xff] %v154
                %v156 = vld [vmem:[%s148 + $0x48] sm:$0xff]
                %157 = vst [vmem:[%s149 + $0x18] sm:$0xff] %v156
                %v158 = vld [vmem:[%s148 + $0x80] sm:$0xff]
                %159 = vst [vmem:[%s149 + $0x20] sm:$0xff] %v158
                %v160 = vld [vmem:[%s148 + $0x88] sm:$0xff]
                %161 = vst [vmem:[%s149 + $0x28] sm:$0xff] %v160
                %v162 = vld [vmem:[%s148 + $0xc0] sm:$0xff]
                %163 = vst [vmem:[%s149 + $0x30] sm:$0xff] %v162
                %v164 = vld [vmem:[%s148 + $0xc8] sm:$0xff]
                %165 = vst [vmem:[%s149 + $0x38] sm:$0xff] %v164
              $region41: #{cnn_lstm_av_forward.7} parent=35 // loop_footer
                %s147 = sadd.s32 1, %s143
              $region42: #{cnn_lstm_av_forward.7} parent=35 // loop_footer_branch
                %142 = sbr.rel target = $region38
              $region43: #{cnn_lstm_av_forward.7} parent=35 // loop_exit
                _
            $region36: #{cnn_lstm_av_forward.7} parent=31 // pred_fallthru
              _
            // Predicated region
            $region44: #{cnn_lstm_av_forward.7} parent=31 // pred_check
              _
            $region45: #{cnn_lstm_av_forward.7} parent=31 // pred_check_branch
              %167 = sbr.rel target = $region47
            $region46: #{cnn_lstm_av_forward.7} parent=31 // pred_region
              _
            $region47: #{cnn_lstm_av_forward.7} parent=31 // pred_fallthru
              _
          $region32: #{cnn_lstm_av_forward.7} parent=27 // pred_fallthru
            _
          %168 = vnop
        $region28: #{cnn_lstm_av_forward.7} parent=23 // pred_fallthru
          _
      $region24: #{cnn_lstm_av_forward.7} parent=5 // pred_fallthru
        _
      %p169 = scmp.le.s32.totalorder 1, %s9
      %p170 = scmp.lt.s32.totalorder %s9, 5
      %p171 = pnand %p169, %p170
      %p172 = pneg %p171
      // Predicated region
      $region48: #{cnn_lstm_av_forward.7} parent=5 // pred_check
        _
      $region49: #{cnn_lstm_av_forward.7} parent=5 // pred_check_branch
        %174 = sbr.rel (%p171) target = $region51
      $region50: #{cnn_lstm_av_forward.7} parent=5 // pred_region
        %s175 = ssub.s32 %s9, 1
        %s176 = sand.u32 %s64, 1
        %s177 = sand.u32 %s64, 1
        %s178 = smul.addr %s177, 64
        %s179 = scalar_lea.vmem [#allocation2], %s178
        // Predicated region
        $region52: #{cnn_lstm_av_forward.7} parent=50 // pred_check
          %p180 = pneg %p77
        $region53: #{cnn_lstm_av_forward.7} parent=50 // pred_check_branch
          %182 = sbr.rel (%p180) target = $region55
        $region54: #{cnn_lstm_av_forward.7} parent=50 // pred_region
          _
        $region55: #{cnn_lstm_av_forward.7} parent=50 // pred_fallthru
          _
        %p183 = pneg %p30
        %p184 = pneg %p27
        %p185 = pneg %p51
        %p186 = pneg %p48
        %s187 = sand.u32 %s64, 1
        %s188 = sand.u32 %s64, 1
        %s189 = smul.addr %s188, 64
        %s190 = scalar_lea.vmem [#allocation2], %s189
        %p191 = pneg %p77
        %p192 = pneg %p74
        %p193 = pneg %p103
        %p194 = pneg %p100
        %s195 = smul.u32 4, %s14
        %p196 = scmp.lt.s32.totalorder %s195, 15
        %s197 = scalar_select %p196, %s195, 15
        %s198 = smul.addr %s197, 8
        %s199 = scalar_lea.vmem %s3, %s198
        %s200 = smul.u32 4, %s14
        %s201 = smul.u32 4, %s14
        %p202 = scmp.lt.s32.totalorder %s201, 15
        %s203 = scalar_select %p202, %s201, 15
        %s204 = smul.addr %s203, 8
        %s205 = scalar_lea.vmem %s3, %s204
        %s206 = smul.u32 4, %s14
        %v208 = vld [vmem:[%s0] sm:$0xf]
        %v209 = vld [vmem:[%s179] sm:$0xff]
        %v210 = vld [vmem:[%s179 + $0x8] sm:$0xff]
        %v211 = vld [vmem:[%s179 + $0x10] sm:$0xff]
        %v212 = vld [vmem:[%s179 + $0x18] sm:$0xff]
        %v213 = vld [vmem:[%s179 + $0x20] sm:$0xff]
        %v214 = vld [vmem:[%s179 + $0x28] sm:$0xff]
        %v215 = vld [vmem:[%s179 + $0x30] sm:$0x33]
        %v216 = vld [vmem:[%s179 + $0x38] sm:$0x33]
        %v217 = vld [vmem:[%s1] sm:$0xff]
        %219 = vset.pattern.permute.xlu0 0
        %220 = vperm.xlu0 %219, %v217
        %v221 = vpop.permute.xlu0 %220
        %v231 = vunpack.c.l.b16 %v209
        %v232 = vunpack.c.h.b16 %v209
        %v233 = vunpack.c.l.b16 %v210
        %v234 = vunpack.c.h.b16 %v210
        %v235 = vunpack.c.l.b16 %v211
        %v236 = vunpack.c.h.b16 %v211
        %v237 = vunpack.c.l.b16 %v212
        %v238 = vunpack.c.h.b16 %v212
        %v239 = vunpack.c.l.b16 %v213
        %v240 = vunpack.c.h.b16 %v213
        %v241 = vunpack.c.l.b16 %v214
        %v242 = vunpack.c.h.b16 %v214
        %v243 = vunpack.c.l.b16 %v215
        %v244 = vunpack.c.h.b16 %v215
        %v245 = vunpack.c.l.b16 %v216
        %v246 = vunpack.c.h.b16 %v216
        %v247 = vpack.c.b16 %v235, %v231
        %v248 = vpack.c.b16 %v236, %v232
        %v249 = vpack.c.b16 %v237, %v233
        %v250 = vpack.c.b16 %v238, %v234
        %v251 = vpack.c.b16 %v243, %v239
        %v252 = vpack.c.b16 %v244, %v240
        %v253 = vpack.c.b16 %v245, %v241
        %v254 = vpack.c.b16 %v246, %v242
        %vm259 = vcmask 220160
        %v261 = vsel %vm259, %v208, 0
        %vm263 = vcmask 1044480
        %vm264 = vcmask 1045504
        %v265 = vsel %vm263, 4294967295, 65535
        %v266 = vsel %vm264, %v265, 0
        %v268 = vand.u32 %v251, %v266
        %v271 = vand.u32 %v252, %v266
        %v274 = vand.u32 %v253, %v266
        %v277 = vand.u32 %v254, %v266
        %279 = vmatpush.bf16.msra.mxu0 0
        %280 = vmatpush.bf16.msra.mxu0 0
        %281 = vmatpush.bf16.msra.mxu0 0
        %282 = vmatpush.bf16.msra.mxu0 0
        %283 = vmatpush.bf16.msra.mxu0 0
        %284 = vmatpush.bf16.msra.mxu0 0
        %285 = vmatpush.bf16.msra.mxu0 %v268
        %286 = vmatpush.bf16.msra.mxu0 %v247
        %287 = vmatmul.bf16.gmra.mxu0 %v261
        %v288 = vpop.f32.mrf.mxu0
        %v289 = vadd.f32 %v221, %v288
        %v290 = vpop.f32.mrf.mxu0
        %291 = vdwg.mxu0
        %292 = vmatpush.bf16.msra.mxu0 0
        %293 = vmatpush.bf16.msra.mxu0 0
        %294 = vmatpush.bf16.msra.mxu0 0
        %295 = vmatpush.bf16.msra.mxu0 0
        %296 = vmatpush.bf16.msra.mxu0 0
        %297 = vmatpush.bf16.msra.mxu0 0
        %298 = vmatpush.bf16.msra.mxu0 %v271
        %299 = vmatpush.bf16.msra.mxu0 %v248
        %300 = vmatmul.bf16.gmra.mxu0 %v261
        %v301 = vpop.f32.mrf.mxu0
        %v302 = vadd.f32 %v221, %v301
        %v303 = vpop.f32.mrf.mxu0
        %304 = vdwg.mxu0
        %305 = vmatpush.bf16.msra.mxu0 0
        %306 = vmatpush.bf16.msra.mxu0 0
        %307 = vmatpush.bf16.msra.mxu0 0
        %308 = vmatpush.bf16.msra.mxu0 0
        %309 = vmatpush.bf16.msra.mxu0 0
        %310 = vmatpush.bf16.msra.mxu0 0
        %311 = vmatpush.bf16.msra.mxu0 %v274
        %312 = vmatpush.bf16.msra.mxu0 %v249
        %313 = vmatmul.bf16.gmra.mxu0 %v261
        %v314 = vpop.f32.mrf.mxu0
        %v315 = vadd.f32 %v221, %v314
        %v316 = vpop.f32.mrf.mxu0
        %317 = vdwg.mxu0
        %318 = vmatpush.bf16.msra.mxu0 0
        %319 = vmatpush.bf16.msra.mxu0 0
        %320 = vmatpush.bf16.msra.mxu0 0
        %321 = vmatpush.bf16.msra.mxu0 0
        %322 = vmatpush.bf16.msra.mxu0 0
        %323 = vmatpush.bf16.msra.mxu0 0
        %324 = vmatpush.bf16.msra.mxu0 %v277
        %325 = vmatpush.bf16.msra.mxu0 %v250
        %326 = vmatmul.bf16.gmra.mxu0 %v261
        %v327 = vpop.f32.mrf.mxu0
        %v328 = vadd.f32 %v221, %v327
        %v329 = vpop.f32.mrf.mxu0
        %330 = vdwg.mxu0
        %v331 = vmax.f32 %v289, 0.0
        %v332 = vmax.f32 %v302, 0.0
        %v333 = vmax.f32 %v315, 0.0
        %v334 = vmax.f32 %v328, 0.0
        %335 = vst [vmem:[%s205] sm:$0xff] %v331
        %336 = vst [vmem:[%s205 + $0x8] sm:$0xff] %v332
        %337 = vst [vmem:[%s205 + $0x10] sm:$0xff] %v333
        %338 = vst [vmem:[%s205 + $0x18] sm:$0xff] %v334
        %s339 = smul.u32 4, %s14
        %p340 = scmp.lt.s32.totalorder %s339, 15
        %s341 = scalar_select %p340, %s339, 15
        %s342 = smul.addr %s341, 8
        %s343 = scalar_lea.vmem %s3, %s342
        // Predicated region
        $region56: #{cnn_lstm_av_forward.7} parent=50 // pred_check
          %p344 = pneg %p100
        $region57: #{cnn_lstm_av_forward.7} parent=50 // pred_check_branch
          %346 = sbr.rel (%p344) target = $region59
        $region58: #{cnn_lstm_av_forward.7} parent=50 // pred_region
          %s347 = smul.u32 4, %s14
        $region59: #{cnn_lstm_av_forward.7} parent=50 // pred_fallthru
          _
      $region51: #{cnn_lstm_av_forward.7} parent=5 // pred_fallthru
        _
      %p348 = scmp.le.s32.totalorder 2, %s9
      // Predicated region
      $region60: #{cnn_lstm_av_forward.7} parent=5 // pred_check
        %p349 = pneg %p348
      $region61: #{cnn_lstm_av_forward.7} parent=5 // pred_check_branch
        %351 = sbr.rel (%p349) target = $region63
      $region62: #{cnn_lstm_av_forward.7} parent=5 // pred_region
        %s352 = ssub.s32 %s9, 2
        // Predicated region
        $region64: #{cnn_lstm_av_forward.7} parent=62 // pred_check
          %p353 = pneg %p106
        $region65: #{cnn_lstm_av_forward.7} parent=62 // pred_check_branch
          %355 = sbr.rel (%p353) target = $region67
        $region66: #{cnn_lstm_av_forward.7} parent=62 // pred_region
          %s356 = smul.u32 4, %s15
          %p357 = scmp.lt.s32.totalorder %s356, 15
          %s358 = scalar_select %p357, %s356, 15
          %s359 = smul.addr %s358, 8
          %s360 = scalar_lea.vmem %s3, %s359
        $region67: #{cnn_lstm_av_forward.7} parent=62 // pred_fallthru
          _
      $region63: #{cnn_lstm_av_forward.7} parent=5 // pred_fallthru
        _
    $region6: #{cnn_lstm_av_forward.7} parent=1 // loop_footer
      %s13 = sadd.s32 1, %s9
    $region7: #{cnn_lstm_av_forward.7} parent=1 // loop_footer_branch
      %8 = sbr.rel target = $region3
    $region8: #{cnn_lstm_av_forward.7} parent=1 // loop_exit
      _

// kernel: cnn_lstm_av_forward.8
$region0: #{cnn_lstm_av_forward.8}
  #allocation0 [shape = 'u32[]', space=smem, size = 0x4, offset = 0x4, fixed_abs, tag = 'smem constant byte address 0x4 - core index']
  #allocation1 [shape = 'u32[72,128]{1,0:T(1,128)}', space=vmem, size = 0x9000, scoped, tag = 'internal scratch']
  %s0 = inlined_call_operand.vmem [shape: bf16[16,72], index: 0, kind: input, shape index: {}]
  %s1 = inlined_call_operand.vmem [shape: f32[16,1], index: 1, kind: input, shape index: {}]
  %s2 = inlined_call_operand.vmem [shape: bf16[72,512], index: 2, kind: input, shape index: {}]
  %s3 = inlined_call_operand.vmem [shape: f32[16,512], index: 3, kind: output, shape index: {}]
  %s4 = sld [smem:[#allocation0]]
  $region22: #{cnn_lstm_av_forward.8} parent=0
    _
  %s6 = ssub.s32 1, %s4
  %s7 = scalar_select 0, %s6, %s4
  // Predicated region
  $region2: #{cnn_lstm_av_forward.8} parent=0 // pred_check
    _
  $region3: #{cnn_lstm_av_forward.8} parent=0 // pred_check_branch
    %9 = sbr.rel (0) target = $region5
  $region4: #{cnn_lstm_av_forward.8} parent=0 // pred_region
    _
  $region5: #{cnn_lstm_av_forward.8} parent=0 // pred_fallthru
    _
  // Predicated region
  $region6: #{cnn_lstm_av_forward.8} parent=0 // pred_check
    _
  $region7: #{cnn_lstm_av_forward.8} parent=0 // pred_check_branch
    %11 = sbr.rel (0) target = $region9
  $region8: #{cnn_lstm_av_forward.8} parent=0 // pred_region
    _
  $region9: #{cnn_lstm_av_forward.8} parent=0 // pred_fallthru
    _
  // Predicated region
  $region10: #{cnn_lstm_av_forward.8} parent=0 // pred_check
    _
  $region11: #{cnn_lstm_av_forward.8} parent=0 // pred_check_branch
    %13 = sbr.rel (0) target = $region13
  $region12: #{cnn_lstm_av_forward.8} parent=0 // pred_region
    _
  $region13: #{cnn_lstm_av_forward.8} parent=0 // pred_fallthru
    _
  %v15 = vld [vmem:[%s0] sm:$0xf]
  %v16 = vld [vmem:[%s0 + $0x4] sm:$0xf]
  %v17 = vld [vmem:[%s2] sm:$0xff]
  %v18 = vld [vmem:[%s2 + $0x8] sm:$0xff]
  %v19 = vld [vmem:[%s2 + $0x10] sm:$0xff]
  %v20 = vld [vmem:[%s2 + $0x18] sm:$0xff]
  %v21 = vld [vmem:[%s2 + $0x20] sm:$0xff]
  %v22 = vld [vmem:[%s2 + $0x28] sm:$0xff]
  %v23 = vld [vmem:[%s2 + $0x30] sm:$0xff]
  %v24 = vld [vmem:[%s2 + $0x38] sm:$0xff]
  %v25 = vld [vmem:[%s2 + $0x40] sm:$0xff]
  %v26 = vld [vmem:[%s2 + $0x48] sm:$0xff]
  %v27 = vld [vmem:[%s2 + $0x50] sm:$0xff]
  %v28 = vld [vmem:[%s2 + $0x58] sm:$0xff]
  %v29 = vld [vmem:[%s2 + $0x60] sm:$0xff]
  %v30 = vld [vmem:[%s2 + $0x68] sm:$0xff]
  %v31 = vld [vmem:[%s2 + $0x70] sm:$0xff]
  %v32 = vld [vmem:[%s2 + $0x78] sm:$0xff]
  %v33 = vld [vmem:[%s2 + $0x80] sm:$0xff]
  %v34 = vld [vmem:[%s2 + $0x88] sm:$0xff]
  %v35 = vld [vmem:[%s1] sm:$0xff]
  %v36 = vld [vmem:[%s1 + $0x8] sm:$0xff]
  %38 = vset.pattern.permute.xlu0 0
  %39 = vperm.xlu0 %38, %v35
  %v40 = vpop.permute.xlu0 %39
  %43 = vset.pattern.permute.xlu0 0
  %44 = vperm.xlu0 %43, %v36
  %v45 = vpop.permute.xlu0 %44
  %v49 = vunpack.c.l.b16 %v15
  %v50 = vunpack.c.l.b16 %v16
  %v51 = vpack.c.b16 %v50, %v49
  %v70 = vunpack.c.l.b16 %v17
  %v71 = vunpack.c.h.b16 %v17
  %v72 = vunpack.c.l.b16 %v18
  %v73 = vunpack.c.h.b16 %v18
  %v74 = vunpack.c.l.b16 %v19
  %v75 = vunpack.c.h.b16 %v19
  %v76 = vunpack.c.l.b16 %v20
  %v77 = vunpack.c.h.b16 %v20
  %v78 = vunpack.c.l.b16 %v21
  %v79 = vunpack.c.h.b16 %v21
  %v80 = vunpack.c.l.b16 %v22
  %v81 = vunpack.c.h.b16 %v22
  %v82 = vunpack.c.l.b16 %v23
  %v83 = vunpack.c.h.b16 %v23
  %v84 = vunpack.c.l.b16 %v24
  %v85 = vunpack.c.h.b16 %v24
  %v86 = vunpack.c.l.b16 %v25
  %v87 = vunpack.c.h.b16 %v25
  %v88 = vunpack.c.l.b16 %v26
  %v89 = vunpack.c.h.b16 %v26
  %v90 = vunpack.c.l.b16 %v27
  %v91 = vunpack.c.h.b16 %v27
  %v92 = vunpack.c.l.b16 %v28
  %v93 = vunpack.c.h.b16 %v28
  %v94 = vunpack.c.l.b16 %v29
  %v95 = vunpack.c.h.b16 %v29
  %v96 = vunpack.c.l.b16 %v30
  %v97 = vunpack.c.h.b16 %v30
  %v98 = vunpack.c.l.b16 %v31
  %v99 = vunpack.c.h.b16 %v31
  %v100 = vunpack.c.l.b16 %v32
  %v101 = vunpack.c.h.b16 %v32
  %v102 = vunpack.c.l.b16 %v33
  %v103 = vunpack.c.h.b16 %v33
  %v104 = vunpack.c.l.b16 %v34
  %v105 = vunpack.c.h.b16 %v34
  %v106 = vpack.c.b16 %v74, %v70
  %v107 = vpack.c.b16 %v75, %v71
  %v108 = vpack.c.b16 %v76, %v72
  %v109 = vpack.c.b16 %v77, %v73
  %v110 = vpack.c.b16 %v82, %v78
  %v111 = vpack.c.b16 %v83, %v79
  %v112 = vpack.c.b16 %v84, %v80
  %v113 = vpack.c.b16 %v85, %v81
  %v114 = vpack.c.b16 %v90, %v86
  %v115 = vpack.c.b16 %v91, %v87
  %v116 = vpack.c.b16 %v92, %v88
  %v117 = vpack.c.b16 %v93, %v89
  %v118 = vpack.c.b16 %v98, %v94
  %v119 = vpack.c.b16 %v99, %v95
  %v120 = vpack.c.b16 %v100, %v96
  %v121 = vpack.c.b16 %v101, %v97
  %v122 = vpack.c.b16 %v102, %v102
  %v123 = vpack.c.b16 %v103, %v103
  %v124 = vpack.c.b16 %v104, %v104
  %v125 = vpack.c.b16 %v105, %v105
  %vm142 = vcmask 588800
  %v144 = vsel %vm142, %v51, 0
  %vm146 = vcmask 1043456
  %v148 = vsel %vm146, %v122, 0
  %v151 = vsel %vm146, %v123, 0
  %v154 = vsel %vm146, %v124, 0
  %v157 = vsel %vm146, %v125, 0
  %159 = vmatpush.bf16.msra.mxu0 0
  %160 = vmatpush.bf16.msra.mxu0 0
  %161 = vmatpush.bf16.msra.mxu0 0
  %162 = vmatpush.bf16.msra.mxu0 %v148
  %163 = vmatpush.bf16.msra.mxu0 %v118
  %164 = vmatpush.bf16.msra.mxu0 %v114
  %165 = vmatpush.bf16.msra.mxu0 %v110
  %166 = vmatpush.bf16.msra.mxu0 %v106
  %167 = vmatmul.bf16.gmra.mxu0 %v144
  %v168 = vpop.f32.mrf.mxu0
  %v169 = vadd.f32 %v40, %v168
  %v170 = vpop.f32.mrf.mxu0
  %v171 = vadd.f32 %v45, %v170
  %172 = vdwg.mxu0
  %173 = vmatpush.bf16.msra.mxu0 0
  %174 = vmatpush.bf16.msra.mxu0 0
  %175 = vmatpush.bf16.msra.mxu0 0
  %176 = vmatpush.bf16.msra.mxu0 %v151
  %177 = vmatpush.bf16.msra.mxu0 %v119
  %178 = vmatpush.bf16.msra.mxu0 %v115
  %179 = vmatpush.bf16.msra.mxu0 %v111
  %180 = vmatpush.bf16.msra.mxu0 %v107
  %181 = vmatmul.bf16.gmra.mxu0 %v144
  %v182 = vpop.f32.mrf.mxu0
  %v183 = vadd.f32 %v40, %v182
  %v184 = vpop.f32.mrf.mxu0
  %v185 = vadd.f32 %v45, %v184
  %186 = vdwg.mxu0
  %187 = vmatpush.bf16.msra.mxu0 0
  %188 = vmatpush.bf16.msra.mxu0 0
  %189 = vmatpush.bf16.msra.mxu0 0
  %190 = vmatpush.bf16.msra.mxu0 %v154
  %191 = vmatpush.bf16.msra.mxu0 %v120
  %192 = vmatpush.bf16.msra.mxu0 %v116
  %193 = vmatpush.bf16.msra.mxu0 %v112
  %194 = vmatpush.bf16.msra.mxu0 %v108
  %195 = vmatmul.bf16.gmra.mxu0 %v144
  %v196 = vpop.f32.mrf.mxu0
  %v197 = vadd.f32 %v40, %v196
  %v198 = vpop.f32.mrf.mxu0
  %v199 = vadd.f32 %v45, %v198
  %200 = vdwg.mxu0
  %201 = vmatpush.bf16.msra.mxu0 0
  %202 = vmatpush.bf16.msra.mxu0 0
  %203 = vmatpush.bf16.msra.mxu0 0
  %204 = vmatpush.bf16.msra.mxu0 %v157
  %205 = vmatpush.bf16.msra.mxu0 %v121
  %206 = vmatpush.bf16.msra.mxu0 %v117
  %207 = vmatpush.bf16.msra.mxu0 %v113
  %208 = vmatpush.bf16.msra.mxu0 %v109
  %209 = vmatmul.bf16.gmra.mxu0 %v144
  %v210 = vpop.f32.mrf.mxu0
  %v211 = vadd.f32 %v40, %v210
  %v212 = vpop.f32.mrf.mxu0
  %v213 = vadd.f32 %v45, %v212
  %214 = vdwg.mxu0
  %v215 = vmax.f32 %v169, 0.0
  %v216 = vmax.f32 %v183, 0.0
  %v217 = vmax.f32 %v197, 0.0
  %v218 = vmax.f32 %v211, 0.0
  %v219 = vmax.f32 %v171, 0.0
  %v220 = vmax.f32 %v185, 0.0
  %v221 = vmax.f32 %v199, 0.0
  %v222 = vmax.f32 %v213, 0.0
  %223 = vst [vmem:[%s3] sm:$0xff] %v215
  %224 = vst [vmem:[%s3 + $0x8] sm:$0xff] %v216
  %225 = vst [vmem:[%s3 + $0x10] sm:$0xff] %v217
  %226 = vst [vmem:[%s3 + $0x18] sm:$0xff] %v218
  %227 = vst [vmem:[%s3 + $0x20] sm:$0xff] %v219
  %228 = vst [vmem:[%s3 + $0x28] sm:$0xff] %v220
  %229 = vst [vmem:[%s3 + $0x30] sm:$0xff] %v221
  %230 = vst [vmem:[%s3 + $0x38] sm:$0xff] %v222
  // Predicated region
  $region14: #{cnn_lstm_av_forward.8} parent=0 // pred_check
    _
  $region15: #{cnn_lstm_av_forward.8} parent=0 // pred_check_branch
    %232 = sbr.rel (0) target = $region17
  $region16: #{cnn_lstm_av_forward.8} parent=0 // pred_region
    _
  $region17: #{cnn_lstm_av_forward.8} parent=0 // pred_fallthru
    _
  // Predicated region
  $region18: #{cnn_lstm_av_forward.8} parent=0 // pred_check
    _
  $region19: #{cnn_lstm_av_forward.8} parent=0 // pred_check_branch
    %234 = sbr.rel (0) target = $region21
  $region20: #{cnn_lstm_av_forward.8} parent=0 // pred_region
    _
  $region21: #{cnn_lstm_av_forward.8} parent=0 // pred_fallthru
    _

// kernel: cnn_lstm_av_forward.9
$region0: #{cnn_lstm_av_forward.9}
  #allocation0 [shape = 'u32[]', space=smem, size = 0x4, offset = 0x4, fixed_abs, tag = 'smem constant byte address 0x4 - core index']
  #allocation1 [shape = 'u32[72,128]{1,0:T(1,128)}', space=vmem, size = 0x9000, scoped, tag = 'internal scratch']
  %s0 = inlined_call_operand.vmem [shape: bf16[8,32], index: 0, kind: input, shape index: {}]
  %s1 = inlined_call_operand.vmem [shape: bf16[32,256], index: 1, kind: input, shape index: {}]
  %s2 = inlined_call_operand.vmem [shape: f32[1,256], index: 2, kind: input, shape index: {}]
  %s3 = inlined_call_operand.vmem [shape: f32[8,256], index: 3, kind: output, shape index: {}]
  %s4 = sld [smem:[#allocation0]]
  $region22: #{cnn_lstm_av_forward.9} parent=0
    _
  %s6 = ssub.s32 1, %s4
  %s7 = scalar_select 0, %s6, %s4
  // Predicated region
  $region2: #{cnn_lstm_av_forward.9} parent=0 // pred_check
    _
  $region3: #{cnn_lstm_av_forward.9} parent=0 // pred_check_branch
    %9 = sbr.rel (0) target = $region5
  $region4: #{cnn_lstm_av_forward.9} parent=0 // pred_region
    _
  $region5: #{cnn_lstm_av_forward.9} parent=0 // pred_fallthru
    _
  // Predicated region
  $region6: #{cnn_lstm_av_forward.9} parent=0 // pred_check
    _
  $region7: #{cnn_lstm_av_forward.9} parent=0 // pred_check_branch
    %11 = sbr.rel (0) target = $region9
  $region8: #{cnn_lstm_av_forward.9} parent=0 // pred_region
    _
  $region9: #{cnn_lstm_av_forward.9} parent=0 // pred_fallthru
    _
  // Predicated region
  $region10: #{cnn_lstm_av_forward.9} parent=0 // pred_check
    _
  $region11: #{cnn_lstm_av_forward.9} parent=0 // pred_check_branch
    %13 = sbr.rel (0) target = $region13
  $region12: #{cnn_lstm_av_forward.9} parent=0 // pred_region
    _
  $region13: #{cnn_lstm_av_forward.9} parent=0 // pred_fallthru
    _
  %v15 = vld [vmem:[%s0] sm:$0xf]
  %v16 = vld [vmem:[%s1] sm:$0xff]
  %v17 = vld [vmem:[%s1 + $0x8] sm:$0xff]
  %v18 = vld [vmem:[%s1 + $0x10] sm:$0xff]
  %v19 = vld [vmem:[%s1 + $0x18] sm:$0xff]
  %v20 = vld [vmem:[%s2] sm:$0x3]
  %v22 = vperm.slane %v20, 0
  %v23 = vperm.slane %v20, 1
  %v30 = vunpack.c.l.b16 %v16
  %v31 = vunpack.c.h.b16 %v16
  %v32 = vunpack.c.l.b16 %v17
  %v33 = vunpack.c.h.b16 %v17
  %v34 = vunpack.c.l.b16 %v18
  %v35 = vunpack.c.h.b16 %v18
  %v36 = vunpack.c.l.b16 %v19
  %v37 = vunpack.c.h.b16 %v19
  %v38 = vpack.c.b16 %v32, %v30
  %v39 = vpack.c.b16 %v33, %v31
  %v40 = vpack.c.b16 %v36, %v34
  %v41 = vpack.c.b16 %v37, %v35
  %vm46 = vcmask 261120
  %v48 = vsel %vm46, %v15, 0
  %50 = vmatpush.bf16.msra.mxu0 0
  %51 = vmatpush.bf16.msra.mxu0 0
  %52 = vmatpush.bf16.msra.mxu0 0
  %53 = vmatpush.bf16.msra.mxu0 0
  %54 = vmatpush.bf16.msra.mxu0 0
  %55 = vmatpush.bf16.msra.mxu0 0
  %56 = vmatpush.bf16.msra.mxu0 %v40
  %57 = vmatpush.bf16.msra.mxu0 %v38
  %58 = vmatmul.bf16.gmra.mxu0 %v48
  %v59 = vpop.f32.mrf.mxu0
  %v60 = vadd.f32 %v22, %v59
  %v61 = vpop.f32.mrf.mxu0
  %62 = vdwg.mxu0
  %63 = vmatpush.bf16.msra.mxu0 0
  %64 = vmatpush.bf16.msra.mxu0 0
  %65 = vmatpush.bf16.msra.mxu0 0
  %66 = vmatpush.bf16.msra.mxu0 0
  %67 = vmatpush.bf16.msra.mxu0 0
  %68 = vmatpush.bf16.msra.mxu0 0
  %69 = vmatpush.bf16.msra.mxu0 %v41
  %70 = vmatpush.bf16.msra.mxu0 %v39
  %71 = vmatmul.bf16.gmra.mxu0 %v48
  %v72 = vpop.f32.mrf.mxu0
  %v73 = vadd.f32 %v23, %v72
  %v74 = vpop.f32.mrf.mxu0
  %75 = vdwg.mxu0
  %76 = vst [vmem:[%s3] sm:$0xff] %v60
  %77 = vst [vmem:[%s3 + $0x8] sm:$0xff] %v73
  // Predicated region
  $region14: #{cnn_lstm_av_forward.9} parent=0 // pred_check
    _
  $region15: #{cnn_lstm_av_forward.9} parent=0 // pred_check_branch
    %79 = sbr.rel (0) target = $region17
  $region16: #{cnn_lstm_av_forward.9} parent=0 // pred_region
    _
  $region17: #{cnn_lstm_av_forward.9} parent=0 // pred_fallthru
    _
  // Predicated region
  $region18: #{cnn_lstm_av_forward.9} parent=0 // pred_check
    _
  $region19: #{cnn_lstm_av_forward.9} parent=0 // pred_check_branch
    %81 = sbr.rel (0) target = $region21
  $region20: #{cnn_lstm_av_forward.9} parent=0 // pred_region
    _
  $region21: #{cnn_lstm_av_forward.9} parent=0 // pred_fallthru
    _

// kernel: cnn_lstm_av_forward.10
$region0: #{cnn_lstm_av_forward.10}
  #allocation0 [shape = 'u32[]', space=smem, size = 0x4, offset = 0x4, fixed_abs, tag = 'smem constant byte address 0x4 - core index']
  #allocation1 [shape = 'u32[72,128]{1,0:T(1,128)}', space=vmem, size = 0x9000, scoped, tag = 'internal scratch']
  #allocation2 [shape = 'f32[2,32]{1,0:T(2,128)}', space=vmem, size = 0x400, scoped, tag = 'scratch operand']
  #allocation3 [shape = 'f32[2,32]{1,0:T(2,128)}', space=vmem, size = 0x400, scoped, tag = 'scratch operand']
  #allocation4 [shape = 'f32[2,32]{1,0:T(2,128)}', space=vmem, size = 0x400, scoped, tag = 'scratch operand']
  #allocation5 [shape = 'f32[2,32]{1,0:T(2,128)}', space=vmem, size = 0x400, scoped, tag = 'scratch operand']
  %s0 = inlined_call_operand.vmem [shape: f32[4,2,256], index: 0, kind: input, shape index: {}, may-alias: {0,1}]
  %s1 = inlined_call_operand.vmem [shape: f32[4,2,256], index: 1, kind: input, shape index: {}, may-alias: {0,1}]
  %s2 = inlined_call_operand.vmem [shape: f32[32,128], index: 2, kind: input, shape index: {}]
  %s3 = inlined_call_operand.vmem [shape: f32[32,128], index: 3, kind: input, shape index: {}]
  %s4 = inlined_call_operand.vmem [shape: f32[4,2,32], index: 4, kind: output, shape index: {0}]
  %s5 = inlined_call_operand.vmem [shape: f32[4,2,32], index: 5, kind: output, shape index: {1}]
  %6 = xla_tuple %s4, %s5
  %s7 = sld [smem:[#allocation0]]
  $region61: #{cnn_lstm_av_forward.10} parent=0
    _
  %s9 = ssub.s32 1, %s7
  %s10 = scalar_select 0, %s9, %s7
  loop: start=0, step=1, limit=6
  $region2: #{cnn_lstm_av_forward.10} parent=0 // loop_pre_header
    _
  $region3: #{cnn_lstm_av_forward.10} parent=0 // loop_header
    %s12 = sphi 0, %s16
    %p13 = scmp.ge.s32.totalorder %s12, 6
    %s22 = sphi 0, %s24
    %s25 = sphi 0, %s22
    %s26 = sphi 0, %s25
    %s42 = sphi 0, %s26
    %s50 = sphi 0, %s52
    %s53 = sphi 0, %s50
    %s54 = sphi 0, %s53
    %s70 = sphi 0, %s54
    %s74 = sphi 0, %s74
    %s76 = sphi 0, %s74
    %s77 = sphi 0, %s76
    %s91 = sphi 0, %s77
    %s95 = sphi 0, %s95
    %s97 = sphi 0, %s95
    %s98 = sphi 0, %s97
    %s112 = sphi 0, %s98
    %s118 = sphi 0, %s120
    %s121 = sphi 0, %s118
    %s122 = sphi 0, %s121
    %s138 = sphi 0, %s122
    %s146 = sphi 0, %s148
    %s149 = sphi 0, %s146
    %s150 = sphi 0, %s149
    %s166 = sphi 0, %s150
  $region4: #{cnn_lstm_av_forward.10} parent=0 // loop_header_branch
    %15 = sbr.rel (%p13) target = $region8
  $region5: #{cnn_lstm_av_forward.10} parent=0 // loop_body
    %s17 = ssub.s32 %s12, 1
    %s18 = ssub.s32 %s12, 2
    %s19 = sadd.s32 %s12, 1
    %s20 = ssub.s32 %s12, %s19
    %p21 = scmp.eq.s32.totalorder %s20, 0
    %s23 = sadd.s32 %s22, 1
    %s24 = scalar_select %p21, %s22, %s23
    %p27 = pneg %p21
    %p28 = scmp.eq.s32.totalorder %s12, 3
    %p29 = por %p27, %p28
    %p30 = scmp.ne.s32.totalorder %s22, %s25
    %p31 = scmp.eq.s32.totalorder %s12, 0
    %p32 = por %p30, %p31
    %p33 = scmp.ne.s32.totalorder %s22, %s25
    %p34 = scmp.eq.s32.totalorder %s17, 3
    %p35 = por %p33, %p34
    %p36 = scmp.ne.s32.totalorder %s25, %s26
    %p37 = scmp.eq.s32.totalorder %s17, 0
    %p38 = por %p36, %p37
    %p39 = scmp.ne.s32.totalorder %s25, %s26
    %p40 = scmp.eq.s32.totalorder %s18, 3
    %p41 = por %p39, %p40
    %p43 = scmp.ne.s32.totalorder %s26, %s42
    %p44 = scmp.eq.s32.totalorder %s18, 0
    %p45 = por %p43, %p44
    %s46 = ssub.s32 3, %s12
    %s47 = ssub.s32 3, %s19
    %s48 = ssub.s32 %s46, %s47
    %p49 = scmp.eq.s32.totalorder %s48, 0
    %s51 = sadd.s32 %s50, 1
    %s52 = scalar_select %p49, %s50, %s51
    %p55 = pneg %p49
    %p56 = scmp.eq.s32.totalorder %s12, 3
    %p57 = por %p55, %p56
    %p58 = scmp.ne.s32.totalorder %s50, %s53
    %p59 = scmp.eq.s32.totalorder %s12, 0
    %p60 = por %p58, %p59
    %p61 = scmp.ne.s32.totalorder %s50, %s53
    %p62 = scmp.eq.s32.totalorder %s17, 3
    %p63 = por %p61, %p62
    %p64 = scmp.ne.s32.totalorder %s53, %s54
    %p65 = scmp.eq.s32.totalorder %s17, 0
    %p66 = por %p64, %p65
    %p67 = scmp.ne.s32.totalorder %s53, %s54
    %p68 = scmp.eq.s32.totalorder %s18, 3
    %p69 = por %p67, %p68
    %p71 = scmp.ne.s32.totalorder %s54, %s70
    %p72 = scmp.eq.s32.totalorder %s18, 0
    %p73 = por %p71, %p72
    %s75 = sadd.s32 %s74, 1
    %p78 = scmp.eq.s32.totalorder %s12, 3
    %p79 = scmp.ne.s32.totalorder %s74, %s76
    %p80 = scmp.eq.s32.totalorder %s12, 0
    %p81 = por %p79, %p80
    %p82 = scmp.ne.s32.totalorder %s74, %s76
    %p83 = scmp.eq.s32.totalorder %s17, 3
    %p84 = por %p82, %p83
    %p85 = scmp.ne.s32.totalorder %s76, %s77
    %p86 = scmp.eq.s32.totalorder %s17, 0
    %p87 = por %p85, %p86
    %p88 = scmp.ne.s32.totalorder %s76, %s77
    %p89 = scmp.eq.s32.totalorder %s18, 3
    %p90 = por %p88, %p89
    %p92 = scmp.ne.s32.totalorder %s77, %s91
    %p93 = scmp.eq.s32.totalorder %s18, 0
    %p94 = por %p92, %p93
    %s96 = sadd.s32 %s95, 1
    %p99 = scmp.eq.s32.totalorder %s12, 3
    %p100 = scmp.ne.s32.totalorder %s95, %s97
    %p101 = scmp.eq.s32.totalorder %s12, 0
    %p102 = por %p100, %p101
    %p103 = scmp.ne.s32.totalorder %s95, %s97
    %p104 = scmp.eq.s32.totalorder %s17, 3
    %p105 = por %p103, %p104
    %p106 = scmp.ne.s32.totalorder %s97, %s98
    %p107 = scmp.eq.s32.totalorder %s17, 0
    %p108 = por %p106, %p107
    %p109 = scmp.ne.s32.totalorder %s97, %s98
    %p110 = scmp.eq.s32.totalorder %s18, 3
    %p111 = por %p109, %p110
    %p113 = scmp.ne.s32.totalorder %s98, %s112
    %p114 = scmp.eq.s32.totalorder %s18, 0
    %p115 = por %p113, %p114
    %s116 = ssub.s32 %s12, %s19
    %p117 = scmp.eq.s32.totalorder %s116, 0
    %s119 = sadd.s32 %s118, 1
    %s120 = scalar_select %p117, %s118, %s119
    %p123 = pneg %p117
    %p124 = scmp.eq.s32.totalorder %s12, 3
    %p125 = por %p123, %p124
    %p126 = scmp.ne.s32.totalorder %s118, %s121
    %p127 = scmp.eq.s32.totalorder %s12, 0
    %p128 = por %p126, %p127
    %p129 = scmp.ne.s32.totalorder %s118, %s121
    %p130 = scmp.eq.s32.totalorder %s17, 3
    %p131 = por %p129, %p130
    %p132 = scmp.ne.s32.totalorder %s121, %s122
    %p133 = scmp.eq.s32.totalorder %s17, 0
    %p134 = por %p132, %p133
    %p135 = scmp.ne.s32.totalorder %s121, %s122
    %p136 = scmp.eq.s32.totalorder %s18, 3
    %p137 = por %p135, %p136
    %p139 = scmp.ne.s32.totalorder %s122, %s138
    %p140 = scmp.eq.s32.totalorder %s18, 0
    %p141 = por %p139, %p140
    %s142 = ssub.s32 3, %s12
    %s143 = ssub.s32 3, %s19
    %s144 = ssub.s32 %s142, %s143
    %p145 = scmp.eq.s32.totalorder %s144, 0
    %s147 = sadd.s32 %s146, 1
    %s148 = scalar_select %p145, %s146, %s147
    %p151 = pneg %p145
    %p152 = scmp.eq.s32.totalorder %s12, 3
    %p153 = por %p151, %p152
    %p154 = scmp.ne.s32.totalorder %s146, %s149
    %p155 = scmp.eq.s32.totalorder %s12, 0
    %p156 = por %p154, %p155
    %p157 = scmp.ne.s32.totalorder %s146, %s149
    %p158 = scmp.eq.s32.totalorder %s17, 3
    %p159 = por %p157, %p158
    %p160 = scmp.ne.s32.totalorder %s149, %s150
    %p161 = scmp.eq.s32.totalorder %s17, 0
    %p162 = por %p160, %p161
    %p163 = scmp.ne.s32.totalorder %s149, %s150
    %p164 = scmp.eq.s32.totalorder %s18, 3
    %p165 = por %p163, %p164
    %p167 = scmp.ne.s32.totalorder %s150, %s166
    %p168 = scmp.eq.s32.totalorder %s18, 0
    %p169 = por %p167, %p168
    %p170 = scmp.le.s32.totalorder 1, %s12
    %p171 = scmp.lt.s32.totalorder %s12, 5
    %p172 = pnand %p170, %p171
    %p173 = pneg %p172
    // Predicated region
    $region9: #{cnn_lstm_av_forward.10} parent=5 // pred_check
      _
    $region10: #{cnn_lstm_av_forward.10} parent=5 // pred_check_branch
      %175 = sbr.rel (%p172) target = $region12
    $region11: #{cnn_lstm_av_forward.10} parent=5 // pred_region
      %s176 = ssub.s32 %s12, 1
      // Predicated region
      $region13: #{cnn_lstm_av_forward.10} parent=11 // pred_check
        %p177 = pneg %p87
      $region14: #{cnn_lstm_av_forward.10} parent=11 // pred_check_branch
        %179 = sbr.rel (%p177) target = $region16
      $region15: #{cnn_lstm_av_forward.10} parent=11 // pred_region
        _
      $region16: #{cnn_lstm_av_forward.10} parent=11 // pred_fallthru
        _
      // Predicated region
      $region17: #{cnn_lstm_av_forward.10} parent=11 // pred_check
        %p180 = pneg %p108
      $region18: #{cnn_lstm_av_forward.10} parent=11 // pred_check_branch
        %182 = sbr.rel (%p180) target = $region20
      $region19: #{cnn_lstm_av_forward.10} parent=11 // pred_region
        _
      $region20: #{cnn_lstm_av_forward.10} parent=11 // pred_fallthru
        _
    $region12: #{cnn_lstm_av_forward.10} parent=5 // pred_fallthru
      _
    %p183 = scmp.lt.s32.totalorder %s12, 4
    // Predicated region
    $region21: #{cnn_lstm_av_forward.10} parent=5 // pred_check
      %p184 = pneg %p183
    $region22: #{cnn_lstm_av_forward.10} parent=5 // pred_check_branch
      %186 = sbr.rel (%p184) target = $region24
    $region23: #{cnn_lstm_av_forward.10} parent=5 // pred_region
      // Predicated region
      $region25: #{cnn_lstm_av_forward.10} parent=23 // pred_check
        %p187 = pneg %p32
      $region26: #{cnn_lstm_av_forward.10} parent=23 // pred_check_branch
        %189 = sbr.rel (%p187) target = $region28
      $region27: #{cnn_lstm_av_forward.10} parent=23 // pred_region
        %p190 = scmp.lt.s32.totalorder %s12, 3
        %s191 = scalar_select %p190, %s12, 3
        %s192 = smul.addr %s191, 2
        %s193 = smul.addr %s192, 2
        %s194 = scalar_lea.vmem %s0, %s193
      $region28: #{cnn_lstm_av_forward.10} parent=23 // pred_fallthru
        _
      // Predicated region
      $region29: #{cnn_lstm_av_forward.10} parent=23 // pred_check
        %p195 = pneg %p60
      $region30: #{cnn_lstm_av_forward.10} parent=23 // pred_check_branch
        %197 = sbr.rel (%p195) target = $region32
      $region31: #{cnn_lstm_av_forward.10} parent=23 // pred_region
        %s198 = ssub.s32 3, %s12
        %p199 = scmp.lt.s32.totalorder %s198, 3
        %s200 = scalar_select %p199, %s198, 3
        %s201 = smul.addr %s200, 2
        %s202 = sadd.s32 1, %s201
        %s203 = smul.addr %s202, 2
        %s204 = scalar_lea.vmem %s1, %s203
        %s205 = ssub.s32 3, %s12
      $region32: #{cnn_lstm_av_forward.10} parent=23 // pred_fallthru
        _
    $region24: #{cnn_lstm_av_forward.10} parent=5 // pred_fallthru
      _
    %p206 = scmp.le.s32.totalorder 1, %s12
    %p207 = scmp.lt.s32.totalorder %s12, 5
    %p208 = pnand %p206, %p207
    %p209 = pneg %p208
    // Predicated region
    $region33: #{cnn_lstm_av_forward.10} parent=5 // pred_check
      _
    $region34: #{cnn_lstm_av_forward.10} parent=5 // pred_check_branch
      %211 = sbr.rel (%p208) target = $region36
    $region35: #{cnn_lstm_av_forward.10} parent=5 // pred_region
      %s212 = ssub.s32 %s12, 1
      %p213 = scmp.lt.s32.totalorder %s17, 3
      %s214 = scalar_select %p213, %s17, 3
      %s215 = smul.addr %s214, 2
      %s216 = smul.addr %s215, 2
      %s217 = scalar_lea.vmem %s0, %s216
      %p218 = pneg %p38
      %p219 = pneg %p35
      %s220 = ssub.s32 3, %s17
      %p221 = scmp.lt.s32.totalorder %s220, 3
      %s222 = scalar_select %p221, %s220, 3
      %s223 = smul.addr %s222, 2
      %s224 = sadd.s32 1, %s223
      %s225 = smul.addr %s224, 2
      %s226 = scalar_lea.vmem %s1, %s225
      %p227 = pneg %p66
      %p228 = pneg %p63
      %p229 = pneg %p87
      %p230 = pneg %p84
      %p231 = pneg %p108
      %p232 = pneg %p105
      %p233 = pneg %p134
      %p234 = pneg %p131
      %p235 = scmp.lt.s32.totalorder %s17, 3
      %s236 = scalar_select %p235, %s17, 3
      %s237 = smul.addr %s236, 2
      %s238 = scalar_lea.vmem %s4, %s237
      %p239 = pneg %p162
      %p240 = pneg %p159
      %s241 = ssub.s32 3, %s17
      %p242 = scmp.lt.s32.totalorder %s241, 3
      %s243 = scalar_select %p242, %s241, 3
      %s244 = smul.addr %s243, 2
      %s245 = scalar_lea.vmem %s5, %s244
      %p246 = scmp.lt.s32.totalorder %s17, 3
      %s247 = scalar_select %p246, %s17, 3
      %s248 = smul.addr %s247, 2
      %s249 = smul.addr %s248, 2
      %s250 = scalar_lea.vmem %s0, %s249
      %s251 = ssub.s32 3, %s17
      %p252 = scmp.lt.s32.totalorder %s251, 3
      %s253 = scalar_select %p252, %s251, 3
      %s254 = smul.addr %s253, 2
      %s255 = sadd.s32 1, %s254
      %s256 = smul.addr %s255, 2
      %s257 = scalar_lea.vmem %s1, %s256
      %s258 = ssub.s32 3, %s17
      %p259 = scmp.lt.s32.totalorder %s17, 3
      %s260 = scalar_select %p259, %s17, 3
      %s261 = smul.addr %s260, 2
      %s262 = scalar_lea.vmem %s4, %s261
      %s263 = ssub.s32 3, %s17
      %p264 = scmp.lt.s32.totalorder %s263, 3
      %s265 = scalar_select %p264, %s263, 3
      %s266 = smul.addr %s265, 2
      %s267 = scalar_lea.vmem %s5, %s266
      %s268 = ssub.s32 3, %s17
      %p269 = scmp.eq.s32.totalorder %s17, 0
      // Predicated region
      $region37: #{cnn_lstm_av_forward.10} parent=35 // pred_check
        %p270 = pneg %p269
      $region38: #{cnn_lstm_av_forward.10} parent=35 // pred_check_branch
        %272 = sbr.rel (%p270) target = $region40
      $region39: #{cnn_lstm_av_forward.10} parent=35 // pred_region
        %vm273 = vcmask 254976
        %274 = vst.msk [vmem:[#allocation2] sm:$0x3] %vm273, 0.0
        %275 = vst.msk [vmem:[#allocation3] sm:$0x3] %vm273, 0.0
        %276 = vst.msk [vmem:[#allocation4] sm:$0x3] %vm273, 0.0
        %277 = vst.msk [vmem:[#allocation5] sm:$0x3] %vm273, 0.0
      $region40: #{cnn_lstm_av_forward.10} parent=35 // pred_fallthru
        _
      %v278 = vld [vmem:[%s250] sm:$0x3]
      %v279 = vld [vmem:[#allocation2] sm:$0x3]
      %v280 = vld [vmem:[%s2] sm:$0xff]
      %v281 = vld [vmem:[%s2 + $0x8] sm:$0xff]
      %v282 = vld [vmem:[%s2 + $0x10] sm:$0xff]
      %v283 = vld [vmem:[%s2 + $0x18] sm:$0xff]
      %vm284 = vcmask 261120
      %v286 = vsel %vm284, %v279, 0
      %288 = vmatpush.msra.mxu0 0.0
      %289 = vmatpush.msra.mxu0 0.0
      %290 = vmatpush.msra.mxu0 0.0
      %291 = vmatpush.msra.mxu0 0.0
      %292 = vmatpush.msra.mxu0 0.0
      %293 = vmatpush.msra.mxu0 0.0
      %294 = vmatpush.msra.mxu0 0.0
      %295 = vmatpush.msra.mxu0 0.0
      %296 = vmatpush.msra.mxu0 0.0
      %297 = vmatpush.msra.mxu0 0.0
      %298 = vmatpush.msra.mxu0 0.0
      %299 = vmatpush.msra.mxu0 0.0
      %300 = vmatpush.msra.mxu0 %v283
      %301 = vmatpush.msra.mxu0 %v282
      %302 = vmatpush.msra.mxu0 %v281
      %303 = vmatpush.msra.mxu0 %v280
      %304 = vmatmul.f32.gmra.mxu0 %v286
      %v305 = vpop.f32.mrf.mxu0
      %v306 = vadd.f32 0.0, %v305
      %307 = vdwg.mxu0
      %v308 = vadd.f32 %v278, %v306
      %v309 = vld [vmem:[#allocation3] sm:$0x3]
      %v310 = vxor.u32 %v308, 2147483648
      %v311 = vmul.f32 %v310, 1.442695
      %v312 = vpow.pop %v311
      %v313 = vadd.f32 %v312, 1.0
      %v314 = vrcp.pop %v313
      %v315 = vmul.f32 %v313, %v314
      %v316 = vsub.f32 1.0, %v315
      %v317 = vmul.f32 %v314, %v316
      %v318 = vadd.f32 %v314, %v317
      %vm319 = vweird.f32 %v313
      %vm320 = vweird.f32 %v314
      %vm321 = vmor %vm319, %vm320
      %v322 = vsel %vm321, %v314, %v318
      %v323 = vand.u32 2147483647, %v313
      %vm324 = vcmp.eq.f32.partialorder %v323, 8.507059e+37
      %v325 = vand.u32 %v313, 2147483648
      %v326 = vor.u32 1.1754944e-38, %v325
      %v327 = vsel %vm324, %v326, %v322
      %v328 = vmul.f32 1.0, %v327
      %v329 = vtanh.pop %v308
      %331 = vrot.lane.b32.xlu0 %v309, 32
      %v332 = vpop.permute.xlu0 %331
      %v334 = vmul.f32 %v328, %v332
      %336 = vrot.lane.b32.xlu0 %v329, 64
      %v337 = vpop.permute.xlu0 %336
      %v339 = vmul.f32 %v328, %v337
      %341 = vrot.lane.b32.xlu0 %v339, 32
      %v342 = vpop.permute.xlu0 %341
      %v344 = vadd.f32 %v334, %v342
      %v345 = vtanh.pop %v344
      %347 = vrot.lane.b32.xlu0 %v345, 64
      %v348 = vpop.permute.xlu0 %347
      %v350 = vmul.f32 %v328, %v348
      %v351 = vld [vmem:[%s257] sm:$0x3]
      %v352 = vld [vmem:[#allocation4] sm:$0x3]
      %v353 = vld [vmem:[%s3] sm:$0xff]
      %v354 = vld [vmem:[%s3 + $0x8] sm:$0xff]
      %v355 = vld [vmem:[%s3 + $0x10] sm:$0xff]
      %v356 = vld [vmem:[%s3 + $0x18] sm:$0xff]
      %v358 = vsel %vm284, %v352, 0
      %360 = vmatpush.msra.mxu0 0.0
      %361 = vmatpush.msra.mxu0 0.0
      %362 = vmatpush.msra.mxu0 0.0
      %363 = vmatpush.msra.mxu0 0.0
      %364 = vmatpush.msra.mxu0 0.0
      %365 = vmatpush.msra.mxu0 0.0
      %366 = vmatpush.msra.mxu0 0.0
      %367 = vmatpush.msra.mxu0 0.0
      %368 = vmatpush.msra.mxu0 0.0
      %369 = vmatpush.msra.mxu0 0.0
      %370 = vmatpush.msra.mxu0 0.0
      %371 = vmatpush.msra.mxu0 0.0
      %372 = vmatpush.msra.mxu0 %v356
      %373 = vmatpush.msra.mxu0 %v355
      %374 = vmatpush.msra.mxu0 %v354
      %375 = vmatpush.msra.mxu0 %v353
      %376 = vmatmul.f32.gmra.mxu0 %v358
      %v377 = vpop.f32.mrf.mxu0
      %v378 = vadd.f32 0.0, %v377
      %379 = vdwg.mxu0
      %v380 = vadd.f32 %v351, %v378
      %v381 = vld [vmem:[#allocation5] sm:$0x3]
      %v382 = vxor.u32 %v380, 2147483648
      %v383 = vmul.f32 %v382, 1.442695
      %v384 = vpow.pop %v383
      %v385 = vadd.f32 %v384, 1.0
      %v386 = vrcp.pop %v385
      %v387 = vmul.f32 %v385, %v386
      %v388 = vsub.f32 1.0, %v387
      %v389 = vmul.f32 %v386, %v388
      %v390 = vadd.f32 %v386, %v389
      %vm391 = vweird.f32 %v385
      %vm392 = vweird.f32 %v386
      %vm393 = vmor %vm391, %vm392
      %v394 = vsel %vm393, %v386, %v390
      %v395 = vand.u32 2147483647, %v385
      %vm396 = vcmp.eq.f32.partialorder %v395, 8.507059e+37
      %v397 = vand.u32 %v385, 2147483648
      %v398 = vor.u32 1.1754944e-38, %v397
      %v399 = vsel %vm396, %v398, %v394
      %v400 = vmul.f32 1.0, %v399
      %v401 = vtanh.pop %v380
      %403 = vrot.lane.b32.xlu0 %v381, 32
      %v404 = vpop.permute.xlu0 %403
      %v406 = vmul.f32 %v400, %v404
      %408 = vrot.lane.b32.xlu0 %v401, 64
      %v409 = vpop.permute.xlu0 %408
      %v411 = vmul.f32 %v400, %v409
      %413 = vrot.lane.b32.xlu0 %v411, 32
      %v414 = vpop.permute.xlu0 %413
      %v416 = vadd.f32 %v406, %v414
      %v417 = vtanh.pop %v416
      %419 = vrot.lane.b32.xlu0 %v417, 64
      %v420 = vpop.permute.xlu0 %419
      %v422 = vmul.f32 %v400, %v420
      %424 = vrot.lane.b32.xlu0 %v350, 32
      %v425 = vpop.permute.xlu0 %424
      %vm427 = vcmask 254976
      %428 = vst.msk [vmem:[#allocation2] sm:$0x3] %vm427, %v425
      %430 = vrot.lane.b32.xlu0 %v344, 96
      %v431 = vpop.permute.xlu0 %430
      %433 = vst.msk [vmem:[#allocation3] sm:$0x3] %vm427, %v431
      %435 = vrot.lane.b32.xlu0 %v422, 32
      %v436 = vpop.permute.xlu0 %435
      %438 = vst.msk [vmem:[#allocation4] sm:$0x3] %vm427, %v436
      %440 = vrot.lane.b32.xlu0 %v416, 96
      %v441 = vpop.permute.xlu0 %440
      %443 = vst.msk [vmem:[#allocation5] sm:$0x3] %vm427, %v441
      %444 = vst.msk [vmem:[%s262] sm:$0x3] %vm427, %v425
      %445 = vst.msk [vmem:[%s267] sm:$0x3] %vm427, %v436
      %p446 = scmp.lt.s32.totalorder %s17, 3
      %s447 = scalar_select %p446, %s17, 3
      %s448 = smul.addr %s447, 2
      %s449 = scalar_lea.vmem %s4, %s448
      %s450 = ssub.s32 3, %s17
      %p451 = scmp.lt.s32.totalorder %s450, 3
      %s452 = scalar_select %p451, %s450, 3
      %s453 = smul.addr %s452, 2
      %s454 = scalar_lea.vmem %s5, %s453
      // Predicated region
      $region41: #{cnn_lstm_av_forward.10} parent=35 // pred_check
        %p455 = pneg %p131
      $region42: #{cnn_lstm_av_forward.10} parent=35 // pred_check_branch
        %457 = sbr.rel (%p455) target = $region44
      $region43: #{cnn_lstm_av_forward.10} parent=35 // pred_region
        _
      $region44: #{cnn_lstm_av_forward.10} parent=35 // pred_fallthru
        _
      // Predicated region
      $region45: #{cnn_lstm_av_forward.10} parent=35 // pred_check
        %p458 = pneg %p159
      $region46: #{cnn_lstm_av_forward.10} parent=35 // pred_check_branch
        %460 = sbr.rel (%p458) target = $region48
      $region47: #{cnn_lstm_av_forward.10} parent=35 // pred_region
        %s461 = ssub.s32 3, %s17
      $region48: #{cnn_lstm_av_forward.10} parent=35 // pred_fallthru
        _
    $region36: #{cnn_lstm_av_forward.10} parent=5 // pred_fallthru
      _
    %p462 = scmp.le.s32.totalorder 2, %s12
    // Predicated region
    $region49: #{cnn_lstm_av_forward.10} parent=5 // pred_check
      %p463 = pneg %p462
    $region50: #{cnn_lstm_av_forward.10} parent=5 // pred_check_branch
      %465 = sbr.rel (%p463) target = $region52
    $region51: #{cnn_lstm_av_forward.10} parent=5 // pred_region
      %s466 = ssub.s32 %s12, 2
      // Predicated region
      $region53: #{cnn_lstm_av_forward.10} parent=51 // pred_check
        %p467 = pneg %p137
      $region54: #{cnn_lstm_av_forward.10} parent=51 // pred_check_branch
        %469 = sbr.rel (%p467) target = $region56
      $region55: #{cnn_lstm_av_forward.10} parent=51 // pred_region
        %p470 = scmp.lt.s32.totalorder %s18, 3
        %s471 = scalar_select %p470, %s18, 3
        %s472 = smul.addr %s471, 2
        %s473 = scalar_lea.vmem %s4, %s472
      $region56: #{cnn_lstm_av_forward.10} parent=51 // pred_fallthru
        _
      // Predicated region
      $region57: #{cnn_lstm_av_forward.10} parent=51 // pred_check
        %p474 = pneg %p165
      $region58: #{cnn_lstm_av_forward.10} parent=51 // pred_check_branch
        %476 = sbr.rel (%p474) target = $region60
      $region59: #{cnn_lstm_av_forward.10} parent=51 // pred_region
        %s477 = ssub.s32 3, %s18
        %p478 = scmp.lt.s32.totalorder %s477, 3
        %s479 = scalar_select %p478, %s477, 3
        %s480 = smul.addr %s479, 2
        %s481 = scalar_lea.vmem %s5, %s480
      $region60: #{cnn_lstm_av_forward.10} parent=51 // pred_fallthru
        _
    $region52: #{cnn_lstm_av_forward.10} parent=5 // pred_fallthru
      _
  $region6: #{cnn_lstm_av_forward.10} parent=0 // loop_footer
    %s16 = sadd.s32 1, %s12
  $region7: #{cnn_lstm_av_forward.10} parent=0 // loop_footer_branch
    %11 = sbr.rel target = $region3
  $region8: #{cnn_lstm_av_forward.10} parent=0 // loop_exit
    _

// kernel: cnn_lstm_av_forward.11
$region0: #{cnn_lstm_av_forward.11}
  #allocation0 [shape = 'u32[]', space=smem, size = 0x4, offset = 0x4, fixed_abs, tag = 'smem constant byte address 0x4 - core index']
  #allocation1 [shape = 'u32[72,128]{1,0:T(1,128)}', space=vmem, size = 0x9000, scoped, tag = 'internal scratch']
  %s0 = inlined_call_operand.vmem [shape: bf16[8,64], index: 0, kind: input, shape index: {}]
  %s1 = inlined_call_operand.vmem [shape: bf16[64,256], index: 1, kind: input, shape index: {}]
  %s2 = inlined_call_operand.vmem [shape: f32[1,256], index: 2, kind: input, shape index: {}]
  %s3 = inlined_call_operand.vmem [shape: f32[8,256], index: 3, kind: output, shape index: {}]
  %s4 = sld [smem:[#allocation0]]
  $region22: #{cnn_lstm_av_forward.11} parent=0
    _
  %s6 = ssub.s32 1, %s4
  %s7 = scalar_select 0, %s6, %s4
  // Predicated region
  $region2: #{cnn_lstm_av_forward.11} parent=0 // pred_check
    _
  $region3: #{cnn_lstm_av_forward.11} parent=0 // pred_check_branch
    %9 = sbr.rel (0) target = $region5
  $region4: #{cnn_lstm_av_forward.11} parent=0 // pred_region
    _
  $region5: #{cnn_lstm_av_forward.11} parent=0 // pred_fallthru
    _
  // Predicated region
  $region6: #{cnn_lstm_av_forward.11} parent=0 // pred_check
    _
  $region7: #{cnn_lstm_av_forward.11} parent=0 // pred_check_branch
    %11 = sbr.rel (0) target = $region9
  $region8: #{cnn_lstm_av_forward.11} parent=0 // pred_region
    _
  $region9: #{cnn_lstm_av_forward.11} parent=0 // pred_fallthru
    _
  // Predicated region
  $region10: #{cnn_lstm_av_forward.11} parent=0 // pred_check
    _
  $region11: #{cnn_lstm_av_forward.11} parent=0 // pred_check_branch
    %13 = sbr.rel (0) target = $region13
  $region12: #{cnn_lstm_av_forward.11} parent=0 // pred_region
    _
  $region13: #{cnn_lstm_av_forward.11} parent=0 // pred_fallthru
    _
  %v15 = vld [vmem:[%s0] sm:$0xf]
  %v16 = vld [vmem:[%s1] sm:$0xff]
  %v17 = vld [vmem:[%s1 + $0x8] sm:$0xff]
  %v18 = vld [vmem:[%s1 + $0x10] sm:$0xff]
  %v19 = vld [vmem:[%s1 + $0x18] sm:$0xff]
  %v20 = vld [vmem:[%s1 + $0x20] sm:$0xff]
  %v21 = vld [vmem:[%s1 + $0x28] sm:$0xff]
  %v22 = vld [vmem:[%s1 + $0x30] sm:$0xff]
  %v23 = vld [vmem:[%s1 + $0x38] sm:$0xff]
  %v24 = vld [vmem:[%s2] sm:$0x3]
  %v26 = vperm.slane %v24, 0
  %v27 = vperm.slane %v24, 1
  %v38 = vunpack.c.l.b16 %v16
  %v39 = vunpack.c.h.b16 %v16
  %v40 = vunpack.c.l.b16 %v17
  %v41 = vunpack.c.h.b16 %v17
  %v42 = vunpack.c.l.b16 %v18
  %v43 = vunpack.c.h.b16 %v18
  %v44 = vunpack.c.l.b16 %v19
  %v45 = vunpack.c.h.b16 %v19
  %v46 = vunpack.c.l.b16 %v20
  %v47 = vunpack.c.h.b16 %v20
  %v48 = vunpack.c.l.b16 %v21
  %v49 = vunpack.c.h.b16 %v21
  %v50 = vunpack.c.l.b16 %v22
  %v51 = vunpack.c.h.b16 %v22
  %v52 = vunpack.c.l.b16 %v23
  %v53 = vunpack.c.h.b16 %v23
  %v54 = vpack.c.b16 %v40, %v38
  %v55 = vpack.c.b16 %v41, %v39
  %v56 = vpack.c.b16 %v44, %v42
  %v57 = vpack.c.b16 %v45, %v43
  %v58 = vpack.c.b16 %v48, %v46
  %v59 = vpack.c.b16 %v49, %v47
  %v60 = vpack.c.b16 %v52, %v50
  %v61 = vpack.c.b16 %v53, %v51
  %vm70 = vcmask 523264
  %v72 = vsel %vm70, %v15, 0
  %74 = vmatpush.bf16.msra.mxu0 0
  %75 = vmatpush.bf16.msra.mxu0 0
  %76 = vmatpush.bf16.msra.mxu0 0
  %77 = vmatpush.bf16.msra.mxu0 0
  %78 = vmatpush.bf16.msra.mxu0 %v60
  %79 = vmatpush.bf16.msra.mxu0 %v58
  %80 = vmatpush.bf16.msra.mxu0 %v56
  %81 = vmatpush.bf16.msra.mxu0 %v54
  %82 = vmatmul.bf16.gmra.mxu0 %v72
  %v83 = vpop.f32.mrf.mxu0
  %v84 = vadd.f32 %v26, %v83
  %v85 = vpop.f32.mrf.mxu0
  %86 = vdwg.mxu0
  %87 = vmatpush.bf16.msra.mxu0 0
  %88 = vmatpush.bf16.msra.mxu0 0
  %89 = vmatpush.bf16.msra.mxu0 0
  %90 = vmatpush.bf16.msra.mxu0 0
  %91 = vmatpush.bf16.msra.mxu0 %v61
  %92 = vmatpush.bf16.msra.mxu0 %v59
  %93 = vmatpush.bf16.msra.mxu0 %v57
  %94 = vmatpush.bf16.msra.mxu0 %v55
  %95 = vmatmul.bf16.gmra.mxu0 %v72
  %v96 = vpop.f32.mrf.mxu0
  %v97 = vadd.f32 %v27, %v96
  %v98 = vpop.f32.mrf.mxu0
  %99 = vdwg.mxu0
  %100 = vst [vmem:[%s3] sm:$0xff] %v84
  %101 = vst [vmem:[%s3 + $0x8] sm:$0xff] %v97
  // Predicated region
  $region14: #{cnn_lstm_av_forward.11} parent=0 // pred_check
    _
  $region15: #{cnn_lstm_av_forward.11} parent=0 // pred_check_branch
    %103 = sbr.rel (0) target = $region17
  $region16: #{cnn_lstm_av_forward.11} parent=0 // pred_region
    _
  $region17: #{cnn_lstm_av_forward.11} parent=0 // pred_fallthru
    _
  // Predicated region
  $region18: #{cnn_lstm_av_forward.11} parent=0 // pred_check
    _
  $region19: #{cnn_lstm_av_forward.11} parent=0 // pred_check_branch
    %105 = sbr.rel (0) target = $region21
  $region20: #{cnn_lstm_av_forward.11} parent=0 // pred_region
    _
  $region21: #{cnn_lstm_av_forward.11} parent=0 // pred_fallthru
    _

// kernel: cnn_lstm_av_forward.12
$region0: #{cnn_lstm_av_forward.12}
  #allocation0 [shape = 'u32[]', space=smem, size = 0x4, offset = 0x4, fixed_abs, tag = 'smem constant byte address 0x4 - core index']
  #allocation1 [shape = 'u32[72,128]{1,0:T(1,128)}', space=vmem, size = 0x9000, scoped, tag = 'internal scratch']
  #allocation2 [shape = 'f32[2,32]{1,0:T(2,128)}', space=vmem, size = 0x400, scoped, tag = 'scratch operand']
  #allocation3 [shape = 'f32[2,32]{1,0:T(2,128)}', space=vmem, size = 0x400, scoped, tag = 'scratch operand']
  %s0 = inlined_call_operand.vmem [shape: f32[4,2,256], index: 0, kind: input, shape index: {}, may-alias: {0,1}]
  %s1 = inlined_call_operand.vmem [shape: f32[4,2,256], index: 1, kind: input, shape index: {}, may-alias: {0,1}]
  %s2 = inlined_call_operand.vmem [shape: f32[32,128], index: 2, kind: input, shape index: {}]
  %s3 = inlined_call_operand.vmem [shape: f32[2,64], index: 3, kind: output, shape index: {}]
  %s4 = sld [smem:[#allocation0]]
  $region53: #{cnn_lstm_av_forward.12} parent=0
    _
  %s6 = ssub.s32 1, %s4
  %s7 = scalar_select 0, %s6, %s4
  loop: start=0, step=1, limit=6
  $region2: #{cnn_lstm_av_forward.12} parent=0 // loop_pre_header
    _
  $region3: #{cnn_lstm_av_forward.12} parent=0 // loop_header
    %s9 = sphi 0, %s13
    %p10 = scmp.ge.s32.totalorder %s9, 6
    %s19 = sphi 0, %s21
    %s22 = sphi 0, %s19
    %s23 = sphi 0, %s22
    %s39 = sphi 0, %s23
    %s43 = sphi 0, %s43
    %s45 = sphi 0, %s43
    %s46 = sphi 0, %s45
    %s60 = sphi 0, %s46
    %s64 = sphi 0, %s64
    %s66 = sphi 0, %s64
    %s67 = sphi 0, %s66
    %s81 = sphi 0, %s67
    %s85 = sphi 0, %s85
    %s87 = sphi 0, %s85
    %s88 = sphi 0, %s87
    %s102 = sphi 0, %s88
  $region4: #{cnn_lstm_av_forward.12} parent=0 // loop_header_branch
    %12 = sbr.rel (%p10) target = $region8
  $region5: #{cnn_lstm_av_forward.12} parent=0 // loop_body
    %s14 = ssub.s32 %s9, 1
    %s15 = ssub.s32 %s9, 2
    %s16 = sadd.s32 %s9, 1
    %s17 = ssub.s32 %s9, %s16
    %p18 = scmp.eq.s32.totalorder %s17, 0
    %s20 = sadd.s32 %s19, 1
    %s21 = scalar_select %p18, %s19, %s20
    %p24 = pneg %p18
    %p25 = scmp.eq.s32.totalorder %s9, 3
    %p26 = por %p24, %p25
    %p27 = scmp.ne.s32.totalorder %s19, %s22
    %p28 = scmp.eq.s32.totalorder %s9, 0
    %p29 = por %p27, %p28
    %p30 = scmp.ne.s32.totalorder %s19, %s22
    %p31 = scmp.eq.s32.totalorder %s14, 3
    %p32 = por %p30, %p31
    %p33 = scmp.ne.s32.totalorder %s22, %s23
    %p34 = scmp.eq.s32.totalorder %s14, 0
    %p35 = por %p33, %p34
    %p36 = scmp.ne.s32.totalorder %s22, %s23
    %p37 = scmp.eq.s32.totalorder %s15, 3
    %p38 = por %p36, %p37
    %p40 = scmp.ne.s32.totalorder %s23, %s39
    %p41 = scmp.eq.s32.totalorder %s15, 0
    %p42 = por %p40, %p41
    %s44 = sadd.s32 %s43, 1
    %p47 = scmp.eq.s32.totalorder %s9, 3
    %p48 = scmp.ne.s32.totalorder %s43, %s45
    %p49 = scmp.eq.s32.totalorder %s9, 0
    %p50 = por %p48, %p49
    %p51 = scmp.ne.s32.totalorder %s43, %s45
    %p52 = scmp.eq.s32.totalorder %s14, 3
    %p53 = por %p51, %p52
    %p54 = scmp.ne.s32.totalorder %s45, %s46
    %p55 = scmp.eq.s32.totalorder %s14, 0
    %p56 = por %p54, %p55
    %p57 = scmp.ne.s32.totalorder %s45, %s46
    %p58 = scmp.eq.s32.totalorder %s15, 3
    %p59 = por %p57, %p58
    %p61 = scmp.ne.s32.totalorder %s46, %s60
    %p62 = scmp.eq.s32.totalorder %s15, 0
    %p63 = por %p61, %p62
    %s65 = sadd.s32 %s64, 1
    %p68 = scmp.eq.s32.totalorder %s9, 3
    %p69 = scmp.ne.s32.totalorder %s64, %s66
    %p70 = scmp.eq.s32.totalorder %s9, 0
    %p71 = por %p69, %p70
    %p72 = scmp.ne.s32.totalorder %s64, %s66
    %p73 = scmp.eq.s32.totalorder %s14, 3
    %p74 = por %p72, %p73
    %p75 = scmp.ne.s32.totalorder %s66, %s67
    %p76 = scmp.eq.s32.totalorder %s14, 0
    %p77 = por %p75, %p76
    %p78 = scmp.ne.s32.totalorder %s66, %s67
    %p79 = scmp.eq.s32.totalorder %s15, 3
    %p80 = por %p78, %p79
    %p82 = scmp.ne.s32.totalorder %s67, %s81
    %p83 = scmp.eq.s32.totalorder %s15, 0
    %p84 = por %p82, %p83
    %s86 = sadd.s32 %s85, 1
    %p89 = scmp.eq.s32.totalorder %s9, 3
    %p90 = scmp.ne.s32.totalorder %s85, %s87
    %p91 = scmp.eq.s32.totalorder %s9, 0
    %p92 = por %p90, %p91
    %p93 = scmp.ne.s32.totalorder %s85, %s87
    %p94 = scmp.eq.s32.totalorder %s14, 3
    %p95 = por %p93, %p94
    %p96 = scmp.ne.s32.totalorder %s87, %s88
    %p97 = scmp.eq.s32.totalorder %s14, 0
    %p98 = por %p96, %p97
    %p99 = scmp.ne.s32.totalorder %s87, %s88
    %p100 = scmp.eq.s32.totalorder %s15, 3
    %p101 = por %p99, %p100
    %p103 = scmp.ne.s32.totalorder %s88, %s102
    %p104 = scmp.eq.s32.totalorder %s15, 0
    %p105 = por %p103, %p104
    %p106 = scmp.le.s32.totalorder 1, %s9
    %p107 = scmp.lt.s32.totalorder %s9, 5
    %p108 = pnand %p106, %p107
    %p109 = pneg %p108
    // Predicated region
    $region9: #{cnn_lstm_av_forward.12} parent=5 // pred_check
      _
    $region10: #{cnn_lstm_av_forward.12} parent=5 // pred_check_branch
      %111 = sbr.rel (%p108) target = $region12
    $region11: #{cnn_lstm_av_forward.12} parent=5 // pred_region
      %s112 = ssub.s32 %s9, 1
      // Predicated region
      $region13: #{cnn_lstm_av_forward.12} parent=11 // pred_check
        %p113 = pneg %p56
      $region14: #{cnn_lstm_av_forward.12} parent=11 // pred_check_branch
        %115 = sbr.rel (%p113) target = $region16
      $region15: #{cnn_lstm_av_forward.12} parent=11 // pred_region
        %s116 = scalar_lea.vmem %s1, 14
      $region16: #{cnn_lstm_av_forward.12} parent=11 // pred_fallthru
        _
      // Predicated region
      $region17: #{cnn_lstm_av_forward.12} parent=11 // pred_check
        %p117 = pneg %p77
      $region18: #{cnn_lstm_av_forward.12} parent=11 // pred_check_branch
        %119 = sbr.rel (%p117) target = $region20
      $region19: #{cnn_lstm_av_forward.12} parent=11 // pred_region
        _
      $region20: #{cnn_lstm_av_forward.12} parent=11 // pred_fallthru
        _
    $region12: #{cnn_lstm_av_forward.12} parent=5 // pred_fallthru
      _
    %p120 = scmp.lt.s32.totalorder %s9, 4
    // Predicated region
    $region21: #{cnn_lstm_av_forward.12} parent=5 // pred_check
      %p121 = pneg %p120
    $region22: #{cnn_lstm_av_forward.12} parent=5 // pred_check_branch
      %123 = sbr.rel (%p121) target = $region24
    $region23: #{cnn_lstm_av_forward.12} parent=5 // pred_region
      // Predicated region
      $region25: #{cnn_lstm_av_forward.12} parent=23 // pred_check
        %p124 = pneg %p29
      $region26: #{cnn_lstm_av_forward.12} parent=23 // pred_check_branch
        %126 = sbr.rel (%p124) target = $region28
      $region27: #{cnn_lstm_av_forward.12} parent=23 // pred_region
        %p127 = scmp.lt.s32.totalorder %s9, 3
        %s128 = scalar_select %p127, %s9, 3
        %s129 = smul.addr %s128, 2
        %s130 = smul.addr %s129, 2
        %s131 = scalar_lea.vmem %s0, %s130
      $region28: #{cnn_lstm_av_forward.12} parent=23 // pred_fallthru
        _
    $region24: #{cnn_lstm_av_forward.12} parent=5 // pred_fallthru
      _
    %p132 = scmp.le.s32.totalorder 1, %s9
    %p133 = scmp.lt.s32.totalorder %s9, 5
    %p134 = pnand %p132, %p133
    %p135 = pneg %p134
    // Predicated region
    $region29: #{cnn_lstm_av_forward.12} parent=5 // pred_check
      _
    $region30: #{cnn_lstm_av_forward.12} parent=5 // pred_check_branch
      %137 = sbr.rel (%p134) target = $region32
    $region31: #{cnn_lstm_av_forward.12} parent=5 // pred_region
      %s138 = ssub.s32 %s9, 1
      %p139 = scmp.lt.s32.totalorder %s14, 3
      %s140 = scalar_select %p139, %s14, 3
      %s141 = smul.addr %s140, 2
      %s142 = smul.addr %s141, 2
      %s143 = scalar_lea.vmem %s0, %s142
      %p144 = pneg %p35
      %p145 = pneg %p32
      %s146 = scalar_lea.vmem %s1, 14
      %p147 = pneg %p56
      %p148 = pneg %p53
      %p149 = pneg %p77
      %p150 = pneg %p74
      %p151 = pneg %p98
      %p152 = pneg %p95
      %p153 = scmp.lt.s32.totalorder %s14, 3
      %s154 = scalar_select %p153, %s14, 3
      %s155 = smul.addr %s154, 2
      %s156 = smul.addr %s155, 2
      %s157 = scalar_lea.vmem %s0, %s156
      %s158 = scalar_lea.vmem %s1, 14
      %p159 = scmp.eq.s32.totalorder %s14, 0
      // Predicated region
      $region33: #{cnn_lstm_av_forward.12} parent=31 // pred_check
        %p160 = pneg %p159
      $region34: #{cnn_lstm_av_forward.12} parent=31 // pred_check_branch
        %162 = sbr.rel (%p160) target = $region36
      $region35: #{cnn_lstm_av_forward.12} parent=31 // pred_region
        %vm163 = vcmask 254976
        %164 = vst.msk [vmem:[#allocation2] sm:$0x3] %vm163, 0.0
        %165 = vst.msk [vmem:[#allocation3] sm:$0x3] %vm163, 0.0
        %v166 = vld [vmem:[%s158] sm:$0x3]
        %v167 = vxor.u32 %v166, 2147483648
        %v168 = vmul.f32 %v167, 1.442695
        %v169 = vpow.pop %v168
        %v170 = vadd.f32 %v169, 1.0
        %v171 = vrcp.pop %v170
        %v172 = vmul.f32 %v170, %v171
        %v173 = vsub.f32 1.0, %v172
        %v174 = vmul.f32 %v171, %v173
        %v175 = vadd.f32 %v171, %v174
        %vm176 = vweird.f32 %v170
        %vm177 = vweird.f32 %v171
        %vm178 = vmor %vm176, %vm177
        %v179 = vsel %vm178, %v171, %v175
        %v180 = vand.u32 2147483647, %v170
        %vm181 = vcmp.eq.f32.partialorder %v180, 8.507059e+37
        %v182 = vand.u32 %v170, 2147483648
        %v183 = vor.u32 1.1754944e-38, %v182
        %v184 = vsel %vm181, %v183, %v179
        %v185 = vmul.f32 1.0, %v184
        %v186 = vtanh.pop %v166
        %v187 = vmul.f32 %v185, 0.0
        %189 = vrot.lane.b32.xlu0 %v186, 64
        %v190 = vpop.permute.xlu0 %189
        %v192 = vmul.f32 %v185, %v190
        %194 = vrot.lane.b32.xlu0 %v192, 32
        %v195 = vpop.permute.xlu0 %194
        %v197 = vadd.f32 %v187, %v195
        %v198 = vtanh.pop %v197
        %200 = vrot.lane.b32.xlu0 %v198, 64
        %v201 = vpop.permute.xlu0 %200
        %v203 = vmul.f32 %v185, %v201
        %205 = vrot.lane.b32.xlu0 %v203, 64
        %v206 = vpop.permute.xlu0 %205
        %vm208 = vcmask 517376
        %209 = vst.msk [vmem:[%s3] sm:$0x3] %vm208, %v206
      $region36: #{cnn_lstm_av_forward.12} parent=31 // pred_fallthru
        _
      %v210 = vld [vmem:[%s157] sm:$0x3]
      %v211 = vld [vmem:[#allocation2] sm:$0x3]
      %v212 = vld [vmem:[%s2] sm:$0xff]
      %v213 = vld [vmem:[%s2 + $0x8] sm:$0xff]
      %v214 = vld [vmem:[%s2 + $0x10] sm:$0xff]
      %v215 = vld [vmem:[%s2 + $0x18] sm:$0xff]
      %vm216 = vcmask 261120
      %v218 = vsel %vm216, %v211, 0
      %220 = vmatpush.msra.mxu0 0.0
      %221 = vmatpush.msra.mxu0 0.0
      %222 = vmatpush.msra.mxu0 0.0
      %223 = vmatpush.msra.mxu0 0.0
      %224 = vmatpush.msra.mxu0 0.0
      %225 = vmatpush.msra.mxu0 0.0
      %226 = vmatpush.msra.mxu0 0.0
      %227 = vmatpush.msra.mxu0 0.0
      %228 = vmatpush.msra.mxu0 0.0
      %229 = vmatpush.msra.mxu0 0.0
      %230 = vmatpush.msra.mxu0 0.0
      %231 = vmatpush.msra.mxu0 0.0
      %232 = vmatpush.msra.mxu0 %v215
      %233 = vmatpush.msra.mxu0 %v214
      %234 = vmatpush.msra.mxu0 %v213
      %235 = vmatpush.msra.mxu0 %v212
      %236 = vmatmul.f32.gmra.mxu0 %v218
      %v237 = vpop.f32.mrf.mxu0
      %v238 = vadd.f32 0.0, %v237
      %239 = vdwg.mxu0
      %v240 = vadd.f32 %v210, %v238
      %v241 = vld [vmem:[#allocation3] sm:$0x3]
      %v242 = vxor.u32 %v240, 2147483648
      %v243 = vmul.f32 %v242, 1.442695
      %v244 = vpow.pop %v243
      %v245 = vadd.f32 %v244, 1.0
      %v246 = vrcp.pop %v245
      %v247 = vmul.f32 %v245, %v246
      %v248 = vsub.f32 1.0, %v247
      %v249 = vmul.f32 %v246, %v248
      %v250 = vadd.f32 %v246, %v249
      %vm251 = vweird.f32 %v245
      %vm252 = vweird.f32 %v246
      %vm253 = vmor %vm251, %vm252
      %v254 = vsel %vm253, %v246, %v250
      %v255 = vand.u32 2147483647, %v245
      %vm256 = vcmp.eq.f32.partialorder %v255, 8.507059e+37
      %v257 = vand.u32 %v245, 2147483648
      %v258 = vor.u32 1.1754944e-38, %v257
      %v259 = vsel %vm256, %v258, %v254
      %v260 = vmul.f32 1.0, %v259
      %v261 = vtanh.pop %v240
      %263 = vrot.lane.b32.xlu0 %v241, 32
      %v264 = vpop.permute.xlu0 %263
      %v266 = vmul.f32 %v260, %v264
      %268 = vrot.lane.b32.xlu0 %v261, 64
      %v269 = vpop.permute.xlu0 %268
      %v271 = vmul.f32 %v260, %v269
      %273 = vrot.lane.b32.xlu0 %v271, 32
      %v274 = vpop.permute.xlu0 %273
      %v276 = vadd.f32 %v266, %v274
      %v277 = vtanh.pop %v276
      %279 = vrot.lane.b32.xlu0 %v277, 64
      %v280 = vpop.permute.xlu0 %279
      %v282 = vmul.f32 %v260, %v280
      %284 = vrot.lane.b32.xlu0 %v282, 32
      %v285 = vpop.permute.xlu0 %284
      %vm287 = vcmask 254976
      %288 = vst.msk [vmem:[#allocation2] sm:$0x3] %vm287, %v285
      %290 = vrot.lane.b32.xlu0 %v276, 96
      %v291 = vpop.permute.xlu0 %290
      %293 = vst.msk [vmem:[#allocation3] sm:$0x3] %vm287, %v291
      %p294 = scmp.eq.s32.totalorder %s14, 3
      // Predicated region
      $region37: #{cnn_lstm_av_forward.12} parent=31 // pred_check
        %p295 = pneg %p294
      $region38: #{cnn_lstm_av_forward.12} parent=31 // pred_check_branch
        %297 = sbr.rel (%p295) target = $region40
      $region39: #{cnn_lstm_av_forward.12} parent=31 // pred_region
        %298 = vst.msk [vmem:[%s3] sm:$0x3] %vm287, %v285
      $region40: #{cnn_lstm_av_forward.12} parent=31 // pred_fallthru
        _
      // Predicated region
      $region41: #{cnn_lstm_av_forward.12} parent=31 // pred_check
        %p299 = pneg %p95
      $region42: #{cnn_lstm_av_forward.12} parent=31 // pred_check_branch
        %301 = sbr.rel (%p299) target = $region44
      $region43: #{cnn_lstm_av_forward.12} parent=31 // pred_region
        _
      $region44: #{cnn_lstm_av_forward.12} parent=31 // pred_fallthru
        _
      // Predicated region
      $region45: #{cnn_lstm_av_forward.12} parent=31 // pred_check
        %p302 = pneg %p95
      $region46: #{cnn_lstm_av_forward.12} parent=31 // pred_check_branch
        %304 = sbr.rel (%p302) target = $region48
      $region47: #{cnn_lstm_av_forward.12} parent=31 // pred_region
        _
      $region48: #{cnn_lstm_av_forward.12} parent=31 // pred_fallthru
        _
    $region32: #{cnn_lstm_av_forward.12} parent=5 // pred_fallthru
      _
    %p305 = scmp.le.s32.totalorder 2, %s9
    // Predicated region
    $region49: #{cnn_lstm_av_forward.12} parent=5 // pred_check
      %p306 = pneg %p305
    $region50: #{cnn_lstm_av_forward.12} parent=5 // pred_check_branch
      %308 = sbr.rel (%p306) target = $region52
    $region51: #{cnn_lstm_av_forward.12} parent=5 // pred_region
      %s309 = ssub.s32 %s9, 2
    $region52: #{cnn_lstm_av_forward.12} parent=5 // pred_fallthru
      _
  $region6: #{cnn_lstm_av_forward.12} parent=0 // loop_footer
    %s13 = sadd.s32 1, %s9
  $region7: #{cnn_lstm_av_forward.12} parent=0 // loop_footer_branch
    %8 = sbr.rel target = $region3
  $region8: #{cnn_lstm_av_forward.12} parent=0 // loop_exit
    _

// kernel: cnn_lstm_av_forward.13
$region0: #{cnn_lstm_av_forward.13}
  #allocation0 [shape = 'u32[]', space=smem, size = 0x4, offset = 0x4, fixed_abs, tag = 'smem constant byte address 0x4 - core index']
  #allocation1 [shape = 'u32[72,128]{1,0:T(1,128)}', space=vmem, size = 0x9000, scoped, tag = 'internal scratch']
  %s0 = inlined_call_operand.vmem [shape: f32[2,64], index: 0, kind: input, shape index: {}]
  %s1 = inlined_call_operand.vmem [shape: f32[64,128], index: 1, kind: input, shape index: {}]
  %s2 = inlined_call_operand.vmem [shape: f32[1,128], index: 2, kind: input, shape index: {}]
  %s3 = inlined_call_operand.vmem [shape: f32[128,2], index: 3, kind: input, shape index: {}]
  %s4 = inlined_call_operand.vmem [shape: f32[1,2], index: 4, kind: input, shape index: {}]
  %s5 = inlined_call_operand.hbm [shape: f32[2,2], index: 5, kind: output, shape index: {}]
  %s6 = sld [smem:[#allocation0]]
  $region30: #{cnn_lstm_av_forward.13} parent=0
    _
  %s8 = ssub.s32 1, %s6
  %s9 = scalar_select 0, %s8, %s6
  $region1: #{cnn_lstm_av_forward.13} parent=0
    #allocation2 [shape = 'u8[1024]{0}', space=vmem, size = 0x400, scoped, tag = 'output window, operand 0, single buffered']
    #allocation3 [shape = 's32[1]{0}', space=sflag, size = 0x4, scoped, tag = 'scoped memory for cnn_lstm_av_forward.13']
    %10 = vsyncpa [#allocation3], 0
    // Predicated region
    $region2: #{cnn_lstm_av_forward.13} parent=1 // pred_check
      _
    $region3: #{cnn_lstm_av_forward.13} parent=1 // pred_check_branch
      %12 = sbr.rel (0) target = $region5
    $region4: #{cnn_lstm_av_forward.13} parent=1 // pred_region
      _
    $region5: #{cnn_lstm_av_forward.13} parent=1 // pred_fallthru
      _
    // Predicated region
    $region6: #{cnn_lstm_av_forward.13} parent=1 // pred_check
      _
    $region7: #{cnn_lstm_av_forward.13} parent=1 // pred_check_branch
      %14 = sbr.rel (0) target = $region9
    $region8: #{cnn_lstm_av_forward.13} parent=1 // pred_region
      _
    $region9: #{cnn_lstm_av_forward.13} parent=1 // pred_fallthru
      _
    // Predicated region
    $region10: #{cnn_lstm_av_forward.13} parent=1 // pred_check
      _
    $region11: #{cnn_lstm_av_forward.13} parent=1 // pred_check_branch
      %16 = sbr.rel (0) target = $region13
    $region12: #{cnn_lstm_av_forward.13} parent=1 // pred_region
      _
    $region13: #{cnn_lstm_av_forward.13} parent=1 // pred_fallthru
      _
    // Predicated region
    $region14: #{cnn_lstm_av_forward.13} parent=1 // pred_check
      _
    $region15: #{cnn_lstm_av_forward.13} parent=1 // pred_check_branch
      %18 = sbr.rel (0) target = $region17
    $region16: #{cnn_lstm_av_forward.13} parent=1 // pred_region
      _
    $region17: #{cnn_lstm_av_forward.13} parent=1 // pred_fallthru
      _
    // Predicated region
    $region18: #{cnn_lstm_av_forward.13} parent=1 // pred_check
      _
    $region19: #{cnn_lstm_av_forward.13} parent=1 // pred_check_branch
      %20 = sbr.rel (0) target = $region21
    $region20: #{cnn_lstm_av_forward.13} parent=1 // pred_region
      _
    $region21: #{cnn_lstm_av_forward.13} parent=1 // pred_fallthru
      _
    %v21 = vld [vmem:[%s0] sm:$0x3]
    %v22 = vld [vmem:[%s1] sm:$0xff]
    %v23 = vld [vmem:[%s1 + $0x8] sm:$0xff]
    %v24 = vld [vmem:[%s1 + $0x10] sm:$0xff]
    %v25 = vld [vmem:[%s1 + $0x18] sm:$0xff]
    %v26 = vld [vmem:[%s1 + $0x20] sm:$0xff]
    %v27 = vld [vmem:[%s1 + $0x28] sm:$0xff]
    %v28 = vld [vmem:[%s1 + $0x30] sm:$0xff]
    %v29 = vld [vmem:[%s1 + $0x38] sm:$0xff]
    %v30 = vld [vmem:[%s2] sm:$0x1]
    %v32 = vperm.slane %v30, 0
    %vm34 = vcmask 523264
    %v36 = vsel %vm34, %v21, 0
    %38 = vmatpush.msra.mxu0 0.0
    %39 = vmatpush.msra.mxu0 0.0
    %40 = vmatpush.msra.mxu0 0.0
    %41 = vmatpush.msra.mxu0 0.0
    %42 = vmatpush.msra.mxu0 0.0
    %43 = vmatpush.msra.mxu0 0.0
    %44 = vmatpush.msra.mxu0 0.0
    %45 = vmatpush.msra.mxu0 0.0
    %46 = vmatpush.msra.mxu0 %v29
    %47 = vmatpush.msra.mxu0 %v28
    %48 = vmatpush.msra.mxu0 %v27
    %49 = vmatpush.msra.mxu0 %v26
    %50 = vmatpush.msra.mxu0 %v25
    %51 = vmatpush.msra.mxu0 %v24
    %52 = vmatpush.msra.mxu0 %v23
    %53 = vmatpush.msra.mxu0 %v22
    %54 = vmatmul.f32.gmra.mxu0 %v36
    %v55 = vpop.f32.mrf.mxu0
    %v56 = vadd.f32 %v32, %v55
    %57 = vdwg.mxu0
    %v58 = vld [vmem:[%s3] sm:$0xff]
    %v59 = vld [vmem:[%s3 + $0x8] sm:$0xff]
    %v60 = vld [vmem:[%s3 + $0x10] sm:$0xff]
    %v61 = vld [vmem:[%s3 + $0x18] sm:$0xff]
    %v62 = vld [vmem:[%s3 + $0x20] sm:$0xff]
    %v63 = vld [vmem:[%s3 + $0x28] sm:$0xff]
    %v64 = vld [vmem:[%s3 + $0x30] sm:$0xff]
    %v65 = vld [vmem:[%s3 + $0x38] sm:$0xff]
    %v66 = vld [vmem:[%s3 + $0x40] sm:$0xff]
    %v67 = vld [vmem:[%s3 + $0x48] sm:$0xff]
    %v68 = vld [vmem:[%s3 + $0x50] sm:$0xff]
    %v69 = vld [vmem:[%s3 + $0x58] sm:$0xff]
    %v70 = vld [vmem:[%s3 + $0x60] sm:$0xff]
    %v71 = vld [vmem:[%s3 + $0x68] sm:$0xff]
    %v72 = vld [vmem:[%s3 + $0x70] sm:$0xff]
    %v73 = vld [vmem:[%s3 + $0x78] sm:$0xff]
    %v74 = vld [vmem:[%s4] sm:$0x1]
    %v76 = vperm.slane %v74, 0
    %78 = vmatpush.msra.mxu0 %v73
    %79 = vmatpush.msra.mxu0 %v72
    %80 = vmatpush.msra.mxu0 %v71
    %81 = vmatpush.msra.mxu0 %v70
    %82 = vmatpush.msra.mxu0 %v69
    %83 = vmatpush.msra.mxu0 %v68
    %84 = vmatpush.msra.mxu0 %v67
    %85 = vmatpush.msra.mxu0 %v66
    %86 = vmatpush.msra.mxu0 %v65
    %87 = vmatpush.msra.mxu0 %v64
    %88 = vmatpush.msra.mxu0 %v63
    %89 = vmatpush.msra.mxu0 %v62
    %90 = vmatpush.msra.mxu0 %v61
    %91 = vmatpush.msra.mxu0 %v60
    %92 = vmatpush.msra.mxu0 %v59
    %93 = vmatpush.msra.mxu0 %v58
    %94 = vmatmul.f32.gmra.mxu0 %v56
    %v95 = vpop.f32.mrf.mxu0
    %v96 = vadd.f32 %v76, %v95
    %97 = vdwg.mxu0
    %vm98 = vcmask 9216
    %99 = vst.msk [vmem:[#allocation2] sm:$0x3] %vm98, %v96
    // Predicated region
    $region22: #{cnn_lstm_av_forward.13} parent=1 // pred_check
      _
    $region23: #{cnn_lstm_av_forward.13} parent=1 // pred_check_branch
      %101 = sbr.rel (0) target = $region25
    $region24: #{cnn_lstm_av_forward.13} parent=1 // pred_region
      %103 = vsyncadd [#allocation3], 0
      %s105 = sshll.u32 [#allocation2], 4
      %s106 = int_to_ptr.vmem [resolvable:$true] %s105
      %s107 = sshll.u32 %s5, 4
      %s108 = int_to_ptr.hbm [resolvable:$true] %s107
      %110 = dma.vmem_to_hbm [thread:$0]  %s106, 32, %s108, [#allocation3]
    $region25: #{cnn_lstm_av_forward.13} parent=1 // pred_fallthru
      _
    // Predicated region
    $region26: #{cnn_lstm_av_forward.13} parent=1 // pred_check
      _
    $region27: #{cnn_lstm_av_forward.13} parent=1 // pred_check_branch
      %112 = sbr.rel (0) target = $region29
    $region28: #{cnn_lstm_av_forward.13} parent=1 // pred_region
      %114 = dma.done [#allocation3], 32
    $region29: #{cnn_lstm_av_forward.13} parent=1 // pred_fallthru
      _
    %115 = vsyncpa [#allocation3], 1

</llo_original>
